<compile_context>
chip_gen: v7x
topology: tpu7x:2x2x1
jax: 0.10.0
libtpu: 0.0.40
codegen_flags: <defaults>
</compile_context>

<pallas_src>
import functools

import numpy as np
import jax
import jax.numpy as jnp
from jax.experimental import pallas as pl
from jax.experimental.pallas import tpu as pltpu


def _round_up(x, m):
    return (x + m - 1) // m * m


# ----------------------------------------------------------------------------
# Pallas kernels
# ----------------------------------------------------------------------------
def _conv1_kernel(x_ref, w_ref, b_ref, m_ref, y_ref, s_ref, q_ref, rhs_ref, *,
                  wp, cin_p):
    """3x3 conv over a flat padded frame; one fused K=9*cin_p MXU matmul.

    x_ref : (1, cin_p, PE)   flat padded input with (wp+1) zero margin each end
    w_ref : (cout, 9*cin_p)  tap-major packed weights
    b_ref : (cout, 1)        conv bias
    m_ref : (1, P)           interior mask (1 on real pixels, 0 on pad ring)
    y_ref : (1, cout, P)     masked raw conv output (pre-BN), P-frame coords
    s_ref : (1, cout, 1)     per-image per-channel sum   over valid pixels
    q_ref : (1, cout, 1)     per-image per-channel sumsq over valid pixels
    rhs_ref: (9*cin_p, P)    VMEM scratch: the 9 shifted taps stacked along K
    """
    p_len = y_ref.shape[2]
    offs = [ky * wp + kx for ky in range(3) for kx in range(3)]
    for t, off in enumerate(offs):
        # lane-offset LOAD (static), sublane-aligned full-lane STORE
        rhs_ref[pl.ds(t * cin_p, cin_p), :] = x_ref[0, :, pl.ds(off, p_len)]
    y = jnp.dot(w_ref[...], rhs_ref[...], preferred_element_type=jnp.float32)
    y = (y + b_ref[...]) * m_ref[...]
    y_ref[0] = y
    s_ref[0] = jnp.sum(y, axis=1, keepdims=True)
    q_ref[0] = jnp.sum(y * y, axis=1, keepdims=True)


def _conv2_fused_kernel(y1_ref, sc_ref, sh_ref, m_ref, sam_ref, w_ref, b_ref,
                        mo_ref, y_ref, s_ref, q_ref, act_ref, rhs_ref, *,
                        wp, c1p, csp):
    """Fused BN1-apply + ReLU + concat(samlayer) + 3x3 conv2 (+ BN2 partials).

    y1_ref : (1, c1, P)          raw conv1 output (masked), P-frame coords
    sc_ref, sh_ref : (c1, 1)     folded BN1 scale / shift
    m_ref  : (1, P)              interior mask in P-frame
    sam_ref: (1, csp, P)         skip connection, padded + flattened (zero ring)
    w_ref  : (c2, 9*(c1p+csp))   packed conv2 weights
    b_ref  : (c2, 1)
    mo_ref : (1, Pout)           validity mask in the output frame
    y_ref  : (1, c2, Pout)       masked raw conv2 output (pre-BN2)
    s_ref, q_ref : (1, c2, 1)    per-image BN2 partial sums
    act_ref: (c1, P)             VMEM scratch: ReLU(BN1(y1)) in P-frame
    rhs_ref: (9*(c1p+csp), Pout) VMEM scratch: conv2 taps stacked along K
    """
    c1 = y1_ref.shape[1]
    p_out = y_ref.shape[2]
    cmidp = c1p + csp
    # BN1 apply + ReLU, re-masked so the padding ring stays exactly zero.
    act_ref[...] = (jnp.maximum(y1_ref[0] * sc_ref[...] + sh_ref[...], 0.0)
                    * m_ref[...])
    offs = [ky * wp + kx for ky in range(3) for kx in range(3)]
    for t, off in enumerate(offs):
        rhs_ref[pl.ds(t * cmidp, c1), :] = act_ref[:, pl.ds(off, p_out)]
        if c1p > c1:  # static branch: keep padded channel rows well-defined
            rhs_ref[pl.ds(t * cmidp + c1, c1p - c1), :] = jnp.zeros(
                (c1p - c1, p_out), jnp.float32)
        rhs_ref[pl.ds(t * cmidp + c1p, csp), :] = sam_ref[0, :, pl.ds(off, p_out)]
    y = jnp.dot(w_ref[...], rhs_ref[...], preferred_element_type=jnp.float32)
    y = (y + b_ref[...]) * mo_ref[...]
    y_ref[0] = y
    s_ref[0] = jnp.sum(y, axis=1, keepdims=True)
    q_ref[0] = jnp.sum(y * y, axis=1, keepdims=True)


def _bn_relu_kernel(y_ref, sc_ref, sh_ref, o_ref):
    """Folded BN apply + ReLU; lane-dense (last dim = flattened spatial)."""
    o_ref[0] = jnp.maximum(y_ref[0] * sc_ref[...] + sh_ref[...], 0.0)


# ----------------------------------------------------------------------------
# Weight packing / upsample helpers (tiny wrapper-side glue)
# ----------------------------------------------------------------------------
def _pack_w1(w_oihw, cin_p):
    """(Cout, Cin, 3, 3) -> (Cout, 9*cin_p), column index = tap*cin_p + ci."""
    cout, cin = w_oihw.shape[0], w_oihw.shape[1]
    w = jnp.transpose(w_oihw, (0, 2, 3, 1)).reshape(cout, 9, cin)
    w = jnp.pad(w, ((0, 0), (0, 0), (0, cin_p - cin)))
    return w.reshape(cout, 9 * cin_p)


def _pack_w2(w_oihw, c1, c1p, cs, csp):
    """Conv2 weights packed to the fused [up_pad8 | sam_pad8] channel layout."""
    cout = w_oihw.shape[0]
    w = jnp.transpose(w_oihw, (0, 2, 3, 1)).reshape(cout, 9, c1 + cs)
    w_up = jnp.pad(w[:, :, :c1], ((0, 0), (0, 0), (0, c1p - c1)))
    w_sam = jnp.pad(w[:, :, c1:], ((0, 0), (0, 0), (0, csp - cs)))
    w = jnp.concatenate([w_up, w_sam], axis=2)
    return w.reshape(cout, 9 * (c1p + csp))


def _bilinear_matrix(n_in, n_out):
    """Separable bilinear-interp matrix, align_corners=True."""
    A = np.zeros((n_out, n_in), dtype=np.float32)
    for i in range(n_out):
        src = i * (n_in - 1) / (n_out - 1) if n_out > 1 else 0.0
        x0 = int(np.floor(src))
        x1 = min(x0 + 1, n_in - 1)
        frac = src - x0
        A[i, x0] += 1.0 - frac
        A[i, x1] += frac
    return jnp.asarray(A)


# ----------------------------------------------------------------------------
# Forward wrapper
# ----------------------------------------------------------------------------
def up_forward(uplayer_nchw, samlayer_nchw, params, eps=1e-5):
    n, c_low, h, w = uplayer_nchw.shape
    _, c_same, h2, w2 = samlayer_nchw.shape
    c_mid = params['w1'].shape[0]
    c_out = params['w2'].shape[0]

    hp, wp = h2 + 2, w2 + 2
    p_full = hp * wp                      # padded-flat frame length
    pe = p_full + 2 * (wp + 1)            # conv1 input frame (extra margins)
    p_out = h2 * wp - 2                   # conv output frame length

    c0p = _round_up(c_low, 8)
    c1p = _round_up(c_mid, 8)
    csp = _round_up(c_same, 8)
    cmidp = c1p + csp

    # --- XLA glue: bilinear upsample (align_corners) + NCHW-flat layout prep ---
    ah = _bilinear_matrix(h, h2)
    aw = _bilinear_matrix(w, w2)
    up = jnp.einsum('oh,pw,nchw->ncop', ah, aw, uplayer_nchw)   # (N, Clow, H2, W2)
    x1 = jnp.pad(up, ((0, 0), (0, c0p - c_low), (1, 1), (1, 1)))
    x1 = x1.reshape(n, c0p, p_full)
    x1e = jnp.pad(x1, ((0, 0), (0, 0), (wp + 1, wp + 1)))       # (N, C0P, PE)

    samp = jnp.pad(samlayer_nchw,
                   ((0, 0), (0, csp - c_same), (1, 1), (1, 1))).reshape(n, csp, p_full)

    # validity masks (host-built constants)
    q_idx = np.arange(p_full)
    hh, ww = q_idx // wp, q_idx % wp
    mask_p = jnp.asarray(
        ((hh >= 1) & (hh <= h2) & (ww >= 1) & (ww <= w2)).astype(np.float32)[None])
    mask_o = jnp.asarray(((np.arange(p_out) % wp) < w2).astype(np.float32)[None])

    w1m = _pack_w1(params['w1'], c0p)                    # (c_mid, 9*c0p)
    b1c = params['b1'].reshape(c_mid, 1)
    w2m = _pack_w2(params['w2'], c_mid, c1p, c_same, csp)  # (c_out, 9*cmidp)
    b2c = params['b2'].reshape(c_out, 1)

    # --------------------------- kernel A: conv1 -----------------------------
    y1, s1, q1 = pl.pallas_call(
        functools.partial(_conv1_kernel, wp=wp, cin_p=c0p),
        out_shape=(
            jax.ShapeDtypeStruct((n, c_mid, p_full), jnp.float32),
            jax.ShapeDtypeStruct((n, c_mid, 1), jnp.float32),
            jax.ShapeDtypeStruct((n, c_mid, 1), jnp.float32),
        ),
        grid_spec=pltpu.PrefetchScalarGridSpec(
            num_scalar_prefetch=0,
            grid=(n,),
            in_specs=[
                pl.BlockSpec((1, c0p, pe), lambda i: (i, 0, 0)),
                pl.BlockSpec((c_mid, 9 * c0p), lambda i: (0, 0)),
                pl.BlockSpec((c_mid, 1), lambda i: (0, 0)),
                pl.BlockSpec((1, p_full), lambda i: (0, 0)),
            ],
            out_specs=(
                pl.BlockSpec((1, c_mid, p_full), lambda i: (i, 0, 0)),
                pl.BlockSpec((1, c_mid, 1), lambda i: (i, 0, 0)),
                pl.BlockSpec((1, c_mid, 1), lambda i: (i, 0, 0)),
            ),
            scratch_shapes=[pltpu.VMEM((9 * c0p, p_full), jnp.float32)],
        ),
        compiler_params=pltpu.CompilerParams(dimension_semantics=("parallel",)),
        cost_estimate=pl.CostEstimate(
            flops=2 * n * c_mid * 9 * c0p * p_full,
            transcendentals=0,
            bytes_accessed=4 * (n * c0p * pe + c_mid * 9 * c0p
                                + n * c_mid * p_full + p_full),
        ),
    )(x1e, w1m, b1c, mask_p)

    # fold BN1 (training-mode batch stats, biased var) into scale/shift
    # NOTE: sum / sum-of-squares stats; fine at these scales (see review note).
    cnt = float(n * h2 * w2)
    mean1 = jnp.sum(s1, axis=0) / cnt                    # (c_mid, 1)
    var1 = jnp.sum(q1, axis=0) / cnt - mean1 * mean1
    scale1 = params['g1'].reshape(c_mid, 1) / jnp.sqrt(var1 + eps)
    shift1 = params['be1'].reshape(c_mid, 1) - mean1 * scale1

    # ---------------- kernel B: BN1+ReLU+concat+conv2 (fused) ----------------
    y2, s2, q2 = pl.pallas_call(
        functools.partial(_conv2_fused_kernel, wp=wp, c1p=c1p, csp=csp),
        out_shape=(
            jax.ShapeDtypeStruct((n, c_out, p_out), jnp.float32),
            jax.ShapeDtypeStruct((n, c_out, 1), jnp.float32),
            jax.ShapeDtypeStruct((n, c_out, 1), jnp.float32),
        ),
        grid_spec=pltpu.PrefetchScalarGridSpec(
            num_scalar_prefetch=0,
            grid=(n,),
            in_specs=[
                pl.BlockSpec((1, c_mid, p_full), lambda i: (i, 0, 0)),
                pl.BlockSpec((c_mid, 1), lambda i: (0, 0)),
                pl.BlockSpec((c_mid, 1), lambda i: (0, 0)),
                pl.BlockSpec((1, p_full), lambda i: (0, 0)),
                pl.BlockSpec((1, csp, p_full), lambda i: (i, 0, 0)),
                pl.BlockSpec((c_out, 9 * cmidp), lambda i: (0, 0)),
                pl.BlockSpec((c_out, 1), lambda i: (0, 0)),
                pl.BlockSpec((1, p_out), lambda i: (0, 0)),
            ],
            out_specs=(
                pl.BlockSpec((1, c_out, p_out), lambda i: (i, 0, 0)),
                pl.BlockSpec((1, c_out, 1), lambda i: (i, 0, 0)),
                pl.BlockSpec((1, c_out, 1), lambda i: (i, 0, 0)),
            ),
            scratch_shapes=[
                pltpu.VMEM((c_mid, p_full), jnp.float32),
                pltpu.VMEM((9 * cmidp, p_out), jnp.float32),
            ],
        ),
        compiler_params=pltpu.CompilerParams(dimension_semantics=("parallel",)),
        cost_estimate=pl.CostEstimate(
            flops=2 * n * c_out * 9 * cmidp * p_out,
            transcendentals=0,
            bytes_accessed=4 * (n * c_mid * p_full + n * csp * p_full
                                + c_out * 9 * cmidp + n * c_out * p_out),
        ),
    )(y1, scale1, shift1, mask_p, samp, w2m, b2c, mask_o)

    # fold BN2
    mean2 = jnp.sum(s2, axis=0) / cnt
    var2 = jnp.sum(q2, axis=0) / cnt - mean2 * mean2
    scale2 = params['g2'].reshape(c_out, 1) / jnp.sqrt(var2 + eps)
    shift2 = params['be2'].reshape(c_out, 1) - mean2 * scale2

    # ----------------- kernel C: BN2 apply + ReLU (lane-dense) ---------------
    y3 = pl.pallas_call(
        _bn_relu_kernel,
        out_shape=jax.ShapeDtypeStruct((n, c_out, p_out), jnp.float32),
        grid_spec=pltpu.PrefetchScalarGridSpec(
            num_scalar_prefetch=0,
            grid=(n,),
            in_specs=[
                pl.BlockSpec((1, c_out, p_out), lambda i: (i, 0, 0)),
                pl.BlockSpec((c_out, 1), lambda i: (0, 0)),
                pl.BlockSpec((c_out, 1), lambda i: (0, 0)),
            ],
            out_specs=pl.BlockSpec((1, c_out, p_out), lambda i: (i, 0, 0)),
        ),
        compiler_params=pltpu.CompilerParams(dimension_semantics=("parallel",)),
        cost_estimate=pl.CostEstimate(
            flops=2 * n * c_out * p_out,
            transcendentals=0,
            bytes_accessed=4 * 2 * n * c_out * p_out,
        ),
    )(y2, scale2, shift2)

    # final extraction back to NCHW (tiny XLA glue: drop the 2 seam lanes / row)
    y3p = jnp.pad(y3, ((0, 0), (0, 0), (0, h2 * wp - p_out)))
    out = y3p.reshape(n, c_out, h2, wp)[:, :, :, :w2]
    return out


# ----------------------------------------------------------------------------
# Pure-JAX reference (for verification)
# ----------------------------------------------------------------------------
def _ref_conv_bn_relu(x_nhwc, w_oihw, bias, gamma, beta, eps=1e-5):
    w_hwio = jnp.transpose(w_oihw, (2, 3, 1, 0))
    y = jax.lax.conv_general_dilated(
        x_nhwc, w_hwio, (1, 1), ((1, 1), (1, 1)),
        dimension_numbers=('NHWC', 'HWIO', 'NHWC'),
        precision=jax.lax.Precision.HIGHEST)
    y = y + bias.reshape(1, 1, 1, -1)
    mean = jnp.mean(y, axis=(0, 1, 2), keepdims=True)
    var = jnp.mean((y - mean) ** 2, axis=(0, 1, 2), keepdims=True)
    y = (y - mean) / jnp.sqrt(var + eps)
    y = y * gamma.reshape(1, 1, 1, -1) + beta.reshape(1, 1, 1, -1)
    return jnp.maximum(y, 0.0)


def ref_forward(uplayer_nchw, samlayer_nchw, params):
    n, c, h, w = uplayer_nchw.shape
    ah = _bilinear_matrix(h, 2 * h)
    aw = _bilinear_matrix(w, 2 * w)
    up = jnp.einsum('oh,pw,nchw->ncop', ah, aw, uplayer_nchw)
    up_nhwc = jnp.transpose(up, (0, 2, 3, 1))
    y1 = _ref_conv_bn_relu(up_nhwc, params['w1'], params['b1'],
                           params['g1'], params['be1'])
    sam_nhwc = jnp.transpose(samlayer_nchw, (0, 2, 3, 1))
    mid = jnp.concatenate([y1, sam_nhwc], axis=-1)
    y2 = _ref_conv_bn_relu(mid, params['w2'], params['b2'],
                           params['g2'], params['be2'])
    return jnp.transpose(y2, (0, 3, 1, 2))


# ----------------------------------------------------------------------------
if __name__ == "__main__":
    # Module config: up(inchannel_low=4, inchannel_same=6, middlechannel=8,
    #                   outchannel=8, transpose=False)
    N, C_LOW, C_SAME, C_MID, C_OUT = 2, 4, 6, 8, 8
    H_LOW, W_LOW = 8, 8                 # uplayer spatial; samlayer is 2x this

    key = jax.random.PRNGKey(0)
    ks = jax.random.split(key, 6)
    params = {
        'w1': 0.1 * jax.random.normal(ks[0], (C_MID, C_LOW, 3, 3), jnp.float32),
        'b1': 0.1 * jax.random.normal(ks[1], (C_MID,), jnp.float32),
        'g1': jnp.ones((C_MID,), jnp.float32),     # BatchNorm2d default init
        'be1': jnp.zeros((C_MID,), jnp.float32),
        'w2': 0.1 * jax.random.normal(ks[2], (C_OUT, C_MID + C_SAME, 3, 3), jnp.float32),
        'b2': 0.1 * jax.random.normal(ks[3], (C_OUT,), jnp.float32),
        'g2': jnp.ones((C_OUT,), jnp.float32),
        'be2': jnp.zeros((C_OUT,), jnp.float32),
    }

    uplayer = jax.random.normal(ks[4], (N, C_LOW, H_LOW, W_LOW), jnp.float32)
    samlayer = jax.random.normal(ks[5], (N, C_SAME, 2 * H_LOW, 2 * W_LOW), jnp.float32)

    out = jax.jit(up_forward)(uplayer, samlayer, params)
    out = jax.block_until_ready(out)

    ref = jax.block_until_ready(ref_forward(uplayer, samlayer, params))
    assert out.shape == (N, C_OUT, 2 * H_LOW, 2 * W_LOW), out.shape
    assert jnp.allclose(out, ref, atol=1e-3, rtol=1e-3), \
        f"max abs err {jnp.max(jnp.abs(out - ref))}"

    print("KERNEL_OK")
</pallas_src>

<mosaic_0001>
module attributes {stable_mosaic.version = 11 : i64} {
  func.func @_conv1_kernel(%arg0: i32, %arg1: memref<1x8x362xf32, #tpu.memory_space<vmem>>, %arg2: memref<8x72xf32, #tpu.memory_space<vmem>>, %arg3: memref<8x1xf32, #tpu.memory_space<vmem>>, %arg4: memref<1x324xf32, #tpu.memory_space<vmem>>, %arg5: memref<1x8x324xf32, #tpu.memory_space<vmem>>, %arg6: memref<1x8x1xf32, #tpu.memory_space<vmem>>, %arg7: memref<1x8x1xf32, #tpu.memory_space<vmem>>, %arg8: memref<72x324xf32, #tpu.memory_space<vmem>>) attributes {dimension_semantics = [#tpu.dimension_semantics<parallel>], iteration_bounds = array<i64: 2>, scalar_prefetch = 0 : i64, scratch_operands = 1 : i64, tpu.core_type = #tpu.core_type<tc>, window_params = [{transform_indices = @transform_0, window_bounds = array<i64: 1, 8, 362>}, {pipeline_mode = #tpu.pipeline_mode<synchronous>, transform_indices = @transform_1, window_bounds = array<i64: 8, 72>}, {pipeline_mode = #tpu.pipeline_mode<synchronous>, transform_indices = @transform_2, window_bounds = array<i64: 8, 1>}, {pipeline_mode = #tpu.pipeline_mode<synchronous>, transform_indices = @transform_3, window_bounds = array<i64: 1, 324>}, {transform_indices = @transform_4, window_bounds = array<i64: 1, 8, 324>}, {transform_indices = @transform_5, window_bounds = array<i64: 1, 8, 1>}, {transform_indices = @transform_6, window_bounds = array<i64: 1, 8, 1>}]} {
    %c0 = arith.constant 0 : index
    %c0_0 = arith.constant 0 : index
    %c0_1 = arith.constant 0 : index
    %0 = vector.load %arg1[%c0, %c0_0, %c0_1] : memref<1x8x362xf32, #tpu.memory_space<vmem>>, vector<1x8x324xf32>
    %1 = vector.shape_cast %0 : vector<1x8x324xf32> to vector<8x324xf32>
    %c0_2 = arith.constant 0 : index
    %c0_3 = arith.constant 0 : index
    %2 = vector.load %arg8[%c0_2, %c0_3] : memref<72x324xf32, #tpu.memory_space<vmem>>, vector<8x324xf32>
    tpu.vector_store %arg8[%c0_2, %c0_3], %1 {strides = array<i32>} : memref<72x324xf32, #tpu.memory_space<vmem>>, vector<8x324xf32>,
    %c0_4 = arith.constant 0 : index
    %c0_5 = arith.constant 0 : index
    %c1 = arith.constant 1 : index
    %3 = vector.load %arg1[%c0_4, %c0_5, %c1] : memref<1x8x362xf32, #tpu.memory_space<vmem>>, vector<1x8x324xf32>
    %4 = vector.shape_cast %3 : vector<1x8x324xf32> to vector<8x324xf32>
    %c8 = arith.constant 8 : index
    %c0_6 = arith.constant 0 : index
    %5 = vector.load %arg8[%c8, %c0_6] : memref<72x324xf32, #tpu.memory_space<vmem>>, vector<8x324xf32>
    tpu.vector_store %arg8[%c8, %c0_6], %4 {strides = array<i32>} : memref<72x324xf32, #tpu.memory_space<vmem>>, vector<8x324xf32>,
    %c0_7 = arith.constant 0 : index
    %c0_8 = arith.constant 0 : index
    %c2 = arith.constant 2 : index
    %6 = vector.load %arg1[%c0_7, %c0_8, %c2] : memref<1x8x362xf32, #tpu.memory_space<vmem>>, vector<1x8x324xf32>
    %7 = vector.shape_cast %6 : vector<1x8x324xf32> to vector<8x324xf32>
    %c16 = arith.constant 16 : index
    %c0_9 = arith.constant 0 : index
    %8 = vector.load %arg8[%c16, %c0_9] : memref<72x324xf32, #tpu.memory_space<vmem>>, vector<8x324xf32>
    tpu.vector_store %arg8[%c16, %c0_9], %7 {strides = array<i32>} : memref<72x324xf32, #tpu.memory_space<vmem>>, vector<8x324xf32>,
    %c0_10 = arith.constant 0 : index
    %c0_11 = arith.constant 0 : index
    %c18 = arith.constant 18 : index
    %9 = vector.load %arg1[%c0_10, %c0_11, %c18] : memref<1x8x362xf32, #tpu.memory_space<vmem>>, vector<1x8x324xf32>
    %10 = vector.shape_cast %9 : vector<1x8x324xf32> to vector<8x324xf32>
    %c24 = arith.constant 24 : index
    %c0_12 = arith.constant 0 : index
    %11 = vector.load %arg8[%c24, %c0_12] : memref<72x324xf32, #tpu.memory_space<vmem>>, vector<8x324xf32>
    tpu.vector_store %arg8[%c24, %c0_12], %10 {strides = array<i32>} : memref<72x324xf32, #tpu.memory_space<vmem>>, vector<8x324xf32>,
    %c0_13 = arith.constant 0 : index
    %c0_14 = arith.constant 0 : index
    %c19 = arith.constant 19 : index
    %12 = vector.load %arg1[%c0_13, %c0_14, %c19] : memref<1x8x362xf32, #tpu.memory_space<vmem>>, vector<1x8x324xf32>
    %13 = vector.shape_cast %12 : vector<1x8x324xf32> to vector<8x324xf32>
    %c32 = arith.constant 32 : index
    %c0_15 = arith.constant 0 : index
    %14 = vector.load %arg8[%c32, %c0_15] : memref<72x324xf32, #tpu.memory_space<vmem>>, vector<8x324xf32>
    tpu.vector_store %arg8[%c32, %c0_15], %13 {strides = array<i32>} : memref<72x324xf32, #tpu.memory_space<vmem>>, vector<8x324xf32>,
    %c0_16 = arith.constant 0 : index
    %c0_17 = arith.constant 0 : index
    %c20 = arith.constant 20 : index
    %15 = vector.load %arg1[%c0_16, %c0_17, %c20] : memref<1x8x362xf32, #tpu.memory_space<vmem>>, vector<1x8x324xf32>
    %16 = vector.shape_cast %15 : vector<1x8x324xf32> to vector<8x324xf32>
    %c40 = arith.constant 40 : index
    %c0_18 = arith.constant 0 : index
    %17 = vector.load %arg8[%c40, %c0_18] : memref<72x324xf32, #tpu.memory_space<vmem>>, vector<8x324xf32>
    tpu.vector_store %arg8[%c40, %c0_18], %16 {strides = array<i32>} : memref<72x324xf32, #tpu.memory_space<vmem>>, vector<8x324xf32>,
    %c0_19 = arith.constant 0 : index
    %c0_20 = arith.constant 0 : index
    %c36 = arith.constant 36 : index
    %18 = vector.load %arg1[%c0_19, %c0_20, %c36] : memref<1x8x362xf32, #tpu.memory_space<vmem>>, vector<1x8x324xf32>
    %19 = vector.shape_cast %18 : vector<1x8x324xf32> to vector<8x324xf32>
    %c48 = arith.constant 48 : index
    %c0_21 = arith.constant 0 : index
    %20 = vector.load %arg8[%c48, %c0_21] : memref<72x324xf32, #tpu.memory_space<vmem>>, vector<8x324xf32>
    tpu.vector_store %arg8[%c48, %c0_21], %19 {strides = array<i32>} : memref<72x324xf32, #tpu.memory_space<vmem>>, vector<8x324xf32>,
    %c0_22 = arith.constant 0 : index
    %c0_23 = arith.constant 0 : index
    %c37 = arith.constant 37 : index
    %21 = vector.load %arg1[%c0_22, %c0_23, %c37] : memref<1x8x362xf32, #tpu.memory_space<vmem>>, vector<1x8x324xf32>
    %22 = vector.shape_cast %21 : vector<1x8x324xf32> to vector<8x324xf32>
    %c56 = arith.constant 56 : index
    %c0_24 = arith.constant 0 : index
    %23 = vector.load %arg8[%c56, %c0_24] : memref<72x324xf32, #tpu.memory_space<vmem>>, vector<8x324xf32>
    tpu.vector_store %arg8[%c56, %c0_24], %22 {strides = array<i32>} : memref<72x324xf32, #tpu.memory_space<vmem>>, vector<8x324xf32>,
    %c0_25 = arith.constant 0 : index
    %c0_26 = arith.constant 0 : index
    %c38 = arith.constant 38 : index
    %24 = vector.load %arg1[%c0_25, %c0_26, %c38] : memref<1x8x362xf32, #tpu.memory_space<vmem>>, vector<1x8x324xf32>
    %25 = vector.shape_cast %24 : vector<1x8x324xf32> to vector<8x324xf32>
    %c64 = arith.constant 64 : index
    %c0_27 = arith.constant 0 : index
    %26 = vector.load %arg8[%c64, %c0_27] : memref<72x324xf32, #tpu.memory_space<vmem>>, vector<8x324xf32>
    tpu.vector_store %arg8[%c64, %c0_27], %25 {strides = array<i32>} : memref<72x324xf32, #tpu.memory_space<vmem>>, vector<8x324xf32>,
    %c0_28 = arith.constant 0 : index
    %c0_29 = arith.constant 0 : index
    %27 = vector.load %arg2[%c0_28, %c0_29] : memref<8x72xf32, #tpu.memory_space<vmem>>, vector<8x72xf32>
    %c0_30 = arith.constant 0 : index
    %c0_31 = arith.constant 0 : index
    %28 = vector.load %arg8[%c0_30, %c0_31] : memref<72x324xf32, #tpu.memory_space<vmem>>, vector<72x324xf32>
    %cst = arith.constant dense<0.000000e+00> : vector<8x324xf32>
    %29 = tpu.matmul %27, %28, %cst {dimension_numbers = #tpu.dot_dimension_numbers<[1], [0], [0], [1], [0, 0, 1, 1], [], []>} : vector<8x72xf32>, vector<72x324xf32>, vector<8x324xf32> -> vector<8x324xf32>
    %c0_32 = arith.constant 0 : index
    %c0_33 = arith.constant 0 : index
    %30 = vector.load %arg3[%c0_32, %c0_33] : memref<8x1xf32, #tpu.memory_space<vmem>>, vector<8x1xf32>
    %31 = vector.broadcast %30 : vector<8x1xf32> to vector<8x324xf32>
    %32 = arith.addf %29, %31 : vector<8x324xf32>
    %c0_34 = arith.constant 0 : index
    %c0_35 = arith.constant 0 : index
    %33 = vector.load %arg4[%c0_34, %c0_35] : memref<1x324xf32, #tpu.memory_space<vmem>>, vector<1x324xf32>
    %34 = vector.broadcast %33 : vector<1x324xf32> to vector<8x324xf32>
    %35 = arith.mulf %32, %34 : vector<8x324xf32>
    %c0_36 = arith.constant 0 : index
    %c0_37 = arith.constant 0 : index
    %c0_38 = arith.constant 0 : index
    %36 = vector.load %arg5[%c0_36, %c0_37, %c0_38] : memref<1x8x324xf32, #tpu.memory_space<vmem>>, vector<1x8x324xf32>
    %37 = vector.shape_cast %36 : vector<1x8x324xf32> to vector<8x324xf32>
    %38 = vector.shape_cast %35 : vector<8x324xf32> to vector<1x8x324xf32>
    tpu.vector_store %arg5[%c0_36, %c0_37, %c0_38], %38 {strides = array<i32>} : memref<1x8x324xf32, #tpu.memory_space<vmem>>, vector<1x8x324xf32>,
    %cst_39 = arith.constant dense<0.000000e+00> : vector<8xf32>
    %39 = vector.multi_reduction <add>, %35, %cst_39 [1] : vector<8x324xf32> to vector<8xf32>
    %40 = vector.shape_cast %39 : vector<8xf32> to vector<8x1xf32>
    %c0_40 = arith.constant 0 : index
    %c0_41 = arith.constant 0 : index
    %c0_42 = arith.constant 0 : index
    %41 = vector.load %arg6[%c0_40, %c0_41, %c0_42] : memref<1x8x1xf32, #tpu.memory_space<vmem>>, vector<1x8x1xf32>
    %42 = vector.shape_cast %41 : vector<1x8x1xf32> to vector<8x1xf32>
    %43 = vector.shape_cast %40 : vector<8x1xf32> to vector<1x8x1xf32>
    tpu.vector_store %arg6[%c0_40, %c0_41, %c0_42], %43 {strides = array<i32>} : memref<1x8x1xf32, #tpu.memory_space<vmem>>, vector<1x8x1xf32>,
    %44 = arith.mulf %35, %35 : vector<8x324xf32>
    %cst_43 = arith.constant dense<0.000000e+00> : vector<8xf32>
    %45 = vector.multi_reduction <add>, %44, %cst_43 [1] : vector<8x324xf32> to vector<8xf32>
    %46 = vector.shape_cast %45 : vector<8xf32> to vector<8x1xf32>
    %c0_44 = arith.constant 0 : index
    %c0_45 = arith.constant 0 : index
    %c0_46 = arith.constant 0 : index
    %47 = vector.load %arg7[%c0_44, %c0_45, %c0_46] : memref<1x8x1xf32, #tpu.memory_space<vmem>>, vector<1x8x1xf32>
    %48 = vector.shape_cast %47 : vector<1x8x1xf32> to vector<8x1xf32>
    %49 = vector.shape_cast %46 : vector<8x1xf32> to vector<1x8x1xf32>
    tpu.vector_store %arg7[%c0_44, %c0_45, %c0_46], %49 {strides = array<i32>} : memref<1x8x1xf32, #tpu.memory_space<vmem>>, vector<1x8x1xf32>,
    return
  }
  func.func @transform_0(%arg0: i32) -> (i32, i32, i32) {
    %c0_i32 = arith.constant 0 : i32
    %c0_i32_0 = arith.constant 0 : i32
    %c0_i32_1 = arith.constant 0 : i32
    return %arg0, %c0_i32, %c0_i32_0 : i32, i32, i32
  }
  func.func @transform_1(%arg0: i32) -> (i32, i32) {
    %c0_i32 = arith.constant 0 : i32
    %c0_i32_0 = arith.constant 0 : i32
    %c0_i32_1 = arith.constant 0 : i32
    return %c0_i32, %c0_i32_0 : i32, i32
  }
  func.func @transform_2(%arg0: i32) -> (i32, i32) {
    %c0_i32 = arith.constant 0 : i32
    %c0_i32_0 = arith.constant 0 : i32
    %c0_i32_1 = arith.constant 0 : i32
    return %c0_i32, %c0_i32_0 : i32, i32
  }
  func.func @transform_3(%arg0: i32) -> (i32, i32) {
    %c0_i32 = arith.constant 0 : i32
    %c0_i32_0 = arith.constant 0 : i32
    %c0_i32_1 = arith.constant 0 : i32
    return %c0_i32, %c0_i32_0 : i32, i32
  }
  func.func @transform_4(%arg0: i32) -> (i32, i32, i32) {
    %c0_i32 = arith.constant 0 : i32
    %c0_i32_0 = arith.constant 0 : i32
    %c0_i32_1 = arith.constant 0 : i32
    return %arg0, %c0_i32, %c0_i32_0 : i32, i32, i32
  }
  func.func @transform_5(%arg0: i32) -> (i32, i32, i32) {
    %c0_i32 = arith.constant 0 : i32
    %c0_i32_0 = arith.constant 0 : i32
    %c0_i32_1 = arith.constant 0 : i32
    return %arg0, %c0_i32, %c0_i32_0 : i32, i32, i32
  }
  func.func @transform_6(%arg0: i32) -> (i32, i32, i32) {
    %c0_i32 = arith.constant 0 : i32
    %c0_i32_0 = arith.constant 0 : i32
    %c0_i32_1 = arith.constant 0 : i32
    return %arg0, %c0_i32, %c0_i32_0 : i32, i32, i32
  }
}

module attributes {stable_mosaic.version = 11 : i64} {
  func.func @_bn_relu_kernel(%arg0: i32, %arg1: memref<1x8x286xf32, #tpu.memory_space<vmem>>, %arg2: memref<8x1xf32, #tpu.memory_space<vmem>>, %arg3: memref<8x1xf32, #tpu.memory_space<vmem>>, %arg4: memref<1x8x286xf32, #tpu.memory_space<vmem>>) attributes {dimension_semantics = [#tpu.dimension_semantics<parallel>], iteration_bounds = array<i64: 2>, scalar_prefetch = 0 : i64, scratch_operands = 0 : i64, tpu.core_type = #tpu.core_type<tc>, window_params = [{transform_indices = @transform_0, window_bounds = array<i64: 1, 8, 286>}, {pipeline_mode = #tpu.pipeline_mode<synchronous>, transform_indices = @transform_1, window_bounds = array<i64: 8, 1>}, {pipeline_mode = #tpu.pipeline_mode<synchronous>, transform_indices = @transform_2, window_bounds = array<i64: 8, 1>}, {transform_indices = @transform_3, window_bounds = array<i64: 1, 8, 286>}]} {
    %c0 = arith.constant 0 : index
    %c0_0 = arith.constant 0 : index
    %c0_1 = arith.constant 0 : index
    %0 = vector.load %arg1[%c0, %c0_0, %c0_1] : memref<1x8x286xf32, #tpu.memory_space<vmem>>, vector<1x8x286xf32>
    %1 = vector.shape_cast %0 : vector<1x8x286xf32> to vector<8x286xf32>
    %c0_2 = arith.constant 0 : index
    %c0_3 = arith.constant 0 : index
    %2 = vector.load %arg2[%c0_2, %c0_3] : memref<8x1xf32, #tpu.memory_space<vmem>>, vector<8x1xf32>
    %3 = vector.broadcast %2 : vector<8x1xf32> to vector<8x286xf32>
    %4 = arith.mulf %1, %3 : vector<8x286xf32>
    %c0_4 = arith.constant 0 : index
    %c0_5 = arith.constant 0 : index
    %5 = vector.load %arg3[%c0_4, %c0_5] : memref<8x1xf32, #tpu.memory_space<vmem>>, vector<8x1xf32>
    %6 = vector.broadcast %5 : vector<8x1xf32> to vector<8x286xf32>
    %7 = arith.addf %4, %6 : vector<8x286xf32>
    %cst = arith.constant 0.000000e+00 : f32
    %8 = vector.broadcast %cst : f32 to vector<8x286xf32>
    %9 = arith.maximumf %7, %8 : vector<8x286xf32>
    %c0_6 = arith.constant 0 : index
    %c0_7 = arith.constant 0 : index
    %c0_8 = arith.constant 0 : index
    %10 = vector.load %arg4[%c0_6, %c0_7, %c0_8] : memref<1x8x286xf32, #tpu.memory_space<vmem>>, vector<1x8x286xf32>
    %11 = vector.shape_cast %10 : vector<1x8x286xf32> to vector<8x286xf32>
    %12 = vector.shape_cast %9 : vector<8x286xf32> to vector<1x8x286xf32>
    tpu.vector_store %arg4[%c0_6, %c0_7, %c0_8], %12 {strides = array<i32>} : memref<1x8x286xf32, #tpu.memory_space<vmem>>, vector<1x8x286xf32>,
    return
  }
  func.func @transform_0(%arg0: i32) -> (i32, i32, i32) {
    %c0_i32 = arith.constant 0 : i32
    %c0_i32_0 = arith.constant 0 : i32
    %c0_i32_1 = arith.constant 0 : i32
    return %arg0, %c0_i32, %c0_i32_0 : i32, i32, i32
  }
  func.func @transform_1(%arg0: i32) -> (i32, i32) {
    %c0_i32 = arith.constant 0 : i32
    %c0_i32_0 = arith.constant 0 : i32
    %c0_i32_1 = arith.constant 0 : i32
    return %c0_i32, %c0_i32_0 : i32, i32
  }
  func.func @transform_2(%arg0: i32) -> (i32, i32) {
    %c0_i32 = arith.constant 0 : i32
    %c0_i32_0 = arith.constant 0 : i32
    %c0_i32_1 = arith.constant 0 : i32
    return %c0_i32, %c0_i32_0 : i32, i32
  }
  func.func @transform_3(%arg0: i32) -> (i32, i32, i32) {
    %c0_i32 = arith.constant 0 : i32
    %c0_i32_0 = arith.constant 0 : i32
    %c0_i32_1 = arith.constant 0 : i32
    return %arg0, %c0_i32, %c0_i32_0 : i32, i32, i32
  }
}

module attributes {stable_mosaic.version = 11 : i64} {
  func.func @_conv2_fused_kernel(%arg0: i32, %arg1: memref<1x8x324xf32, #tpu.memory_space<vmem>>, %arg2: memref<8x1xf32, #tpu.memory_space<vmem>>, %arg3: memref<8x1xf32, #tpu.memory_space<vmem>>, %arg4: memref<1x324xf32, #tpu.memory_space<vmem>>, %arg5: memref<1x8x324xf32, #tpu.memory_space<vmem>>, %arg6: memref<8x144xf32, #tpu.memory_space<vmem>>, %arg7: memref<8x1xf32, #tpu.memory_space<vmem>>, %arg8: memref<1x286xf32, #tpu.memory_space<vmem>>, %arg9: memref<1x8x286xf32, #tpu.memory_space<vmem>>, %arg10: memref<1x8x1xf32, #tpu.memory_space<vmem>>, %arg11: memref<1x8x1xf32, #tpu.memory_space<vmem>>, %arg12: memref<8x324xf32, #tpu.memory_space<vmem>>, %arg13: memref<144x286xf32, #tpu.memory_space<vmem>>) attributes {dimension_semantics = [#tpu.dimension_semantics<parallel>], iteration_bounds = array<i64: 2>, scalar_prefetch = 0 : i64, scratch_operands = 2 : i64, tpu.core_type = #tpu.core_type<tc>, window_params = [{transform_indices = @transform_0, window_bounds = array<i64: 1, 8, 324>}, {pipeline_mode = #tpu.pipeline_mode<synchronous>, transform_indices = @transform_1, window_bounds = array<i64: 8, 1>}, {pipeline_mode = #tpu.pipeline_mode<synchronous>, transform_indices = @transform_2, window_bounds = array<i64: 8, 1>}, {pipeline_mode = #tpu.pipeline_mode<synchronous>, transform_indices = @transform_3, window_bounds = array<i64: 1, 324>}, {transform_indices = @transform_4, window_bounds = array<i64: 1, 8, 324>}, {pipeline_mode = #tpu.pipeline_mode<synchronous>, transform_indices = @transform_5, window_bounds = array<i64: 8, 144>}, {pipeline_mode = #tpu.pipeline_mode<synchronous>, transform_indices = @transform_6, window_bounds = array<i64: 8, 1>}, {pipeline_mode = #tpu.pipeline_mode<synchronous>, transform_indices = @transform_7, window_bounds = array<i64: 1, 286>}, {transform_indices = @transform_8, window_bounds = array<i64: 1, 8, 286>}, {transform_indices = @transform_9, window_bounds = array<i64: 1, 8, 1>}, {transform_indices = @transform_10, window_bounds = array<i64: 1, 8, 1>}]} {
    %c0 = arith.constant 0 : index
    %c0_0 = arith.constant 0 : index
    %c0_1 = arith.constant 0 : index
    %0 = vector.load %arg1[%c0, %c0_0, %c0_1] : memref<1x8x324xf32, #tpu.memory_space<vmem>>, vector<1x8x324xf32>
    %1 = vector.shape_cast %0 : vector<1x8x324xf32> to vector<8x324xf32>
    %c0_2 = arith.constant 0 : index
    %c0_3 = arith.constant 0 : index
    %2 = vector.load %arg2[%c0_2, %c0_3] : memref<8x1xf32, #tpu.memory_space<vmem>>, vector<8x1xf32>
    %3 = vector.broadcast %2 : vector<8x1xf32> to vector<8x324xf32>
    %4 = arith.mulf %1, %3 : vector<8x324xf32>
    %c0_4 = arith.constant 0 : index
    %c0_5 = arith.constant 0 : index
    %5 = vector.load %arg3[%c0_4, %c0_5] : memref<8x1xf32, #tpu.memory_space<vmem>>, vector<8x1xf32>
    %6 = vector.broadcast %5 : vector<8x1xf32> to vector<8x324xf32>
    %7 = arith.addf %4, %6 : vector<8x324xf32>
    %cst = arith.constant 0.000000e+00 : f32
    %8 = vector.broadcast %cst : f32 to vector<8x324xf32>
    %9 = arith.maximumf %7, %8 : vector<8x324xf32>
    %c0_6 = arith.constant 0 : index
    %c0_7 = arith.constant 0 : index
    %10 = vector.load %arg4[%c0_6, %c0_7] : memref<1x324xf32, #tpu.memory_space<vmem>>, vector<1x324xf32>
    %11 = vector.broadcast %10 : vector<1x324xf32> to vector<8x324xf32>
    %12 = arith.mulf %9, %11 : vector<8x324xf32>
    %c0_8 = arith.constant 0 : index
    %c0_9 = arith.constant 0 : index
    %13 = vector.load %arg12[%c0_8, %c0_9] : memref<8x324xf32, #tpu.memory_space<vmem>>, vector<8x324xf32>
    tpu.vector_store %arg12[%c0_8, %c0_9], %12 {strides = array<i32>} : memref<8x324xf32, #tpu.memory_space<vmem>>, vector<8x324xf32>,
    %c0_10 = arith.constant 0 : index
    %c0_11 = arith.constant 0 : index
    %14 = vector.load %arg12[%c0_10, %c0_11] : memref<8x324xf32, #tpu.memory_space<vmem>>, vector<8x286xf32>
    %c0_12 = arith.constant 0 : index
    %c0_13 = arith.constant 0 : index
    %15 = vector.load %arg13[%c0_12, %c0_13] : memref<144x286xf32, #tpu.memory_space<vmem>>, vector<8x286xf32>
    tpu.vector_store %arg13[%c0_12, %c0_13], %14 {strides = array<i32>} : memref<144x286xf32, #tpu.memory_space<vmem>>, vector<8x286xf32>,
    %c0_14 = arith.constant 0 : index
    %c0_15 = arith.constant 0 : index
    %c0_16 = arith.constant 0 : index
    %16 = vector.load %arg5[%c0_14, %c0_15, %c0_16] : memref<1x8x324xf32, #tpu.memory_space<vmem>>, vector<1x8x286xf32>
    %17 = vector.shape_cast %16 : vector<1x8x286xf32> to vector<8x286xf32>
    %c8 = arith.constant 8 : index
    %c0_17 = arith.constant 0 : index
    %18 = vector.load %arg13[%c8, %c0_17] : memref<144x286xf32, #tpu.memory_space<vmem>>, vector<8x286xf32>
    tpu.vector_store %arg13[%c8, %c0_17], %17 {strides = array<i32>} : memref<144x286xf32, #tpu.memory_space<vmem>>, vector<8x286xf32>,
    %c0_18 = arith.constant 0 : index
    %c1 = arith.constant 1 : index
    %19 = vector.load %arg12[%c0_18, %c1] : memref<8x324xf32, #tpu.memory_space<vmem>>, vector<8x286xf32>
    %c16 = arith.constant 16 : index
    %c0_19 = arith.constant 0 : index
    %20 = vector.load %arg13[%c16, %c0_19] : memref<144x286xf32, #tpu.memory_space<vmem>>, vector<8x286xf32>
    tpu.vector_store %arg13[%c16, %c0_19], %19 {strides = array<i32>} : memref<144x286xf32, #tpu.memory_space<vmem>>, vector<8x286xf32>,
    %c0_20 = arith.constant 0 : index
    %c0_21 = arith.constant 0 : index
    %c1_22 = arith.constant 1 : index
    %21 = vector.load %arg5[%c0_20, %c0_21, %c1_22] : memref<1x8x324xf32, #tpu.memory_space<vmem>>, vector<1x8x286xf32>
    %22 = vector.shape_cast %21 : vector<1x8x286xf32> to vector<8x286xf32>
    %c24 = arith.constant 24 : index
    %c0_23 = arith.constant 0 : index
    %23 = vector.load %arg13[%c24, %c0_23] : memref<144x286xf32, #tpu.memory_space<vmem>>, vector<8x286xf32>
    tpu.vector_store %arg13[%c24, %c0_23], %22 {strides = array<i32>} : memref<144x286xf32, #tpu.memory_space<vmem>>, vector<8x286xf32>,
    %c0_24 = arith.constant 0 : index
    %c2 = arith.constant 2 : index
    %24 = vector.load %arg12[%c0_24, %c2] : memref<8x324xf32, #tpu.memory_space<vmem>>, vector<8x286xf32>
    %c32 = arith.constant 32 : index
    %c0_25 = arith.constant 0 : index
    %25 = vector.load %arg13[%c32, %c0_25] : memref<144x286xf32, #tpu.memory_space<vmem>>, vector<8x286xf32>
    tpu.vector_store %arg13[%c32, %c0_25], %24 {strides = array<i32>} : memref<144x286xf32, #tpu.memory_space<vmem>>, vector<8x286xf32>,
    %c0_26 = arith.constant 0 : index
    %c0_27 = arith.constant 0 : index
    %c2_28 = arith.constant 2 : index
    %26 = vector.load %arg5[%c0_26, %c0_27, %c2_28] : memref<1x8x324xf32, #tpu.memory_space<vmem>>, vector<1x8x286xf32>
    %27 = vector.shape_cast %26 : vector<1x8x286xf32> to vector<8x286xf32>
    %c40 = arith.constant 40 : index
    %c0_29 = arith.constant 0 : index
    %28 = vector.load %arg13[%c40, %c0_29] : memref<144x286xf32, #tpu.memory_space<vmem>>, vector<8x286xf32>
    tpu.vector_store %arg13[%c40, %c0_29], %27 {strides = array<i32>} : memref<144x286xf32, #tpu.memory_space<vmem>>, vector<8x286xf32>,
    %c0_30 = arith.constant 0 : index
    %c18 = arith.constant 18 : index
    %29 = vector.load %arg12[%c0_30, %c18] : memref<8x324xf32, #tpu.memory_space<vmem>>, vector<8x286xf32>
    %c48 = arith.constant 48 : index
    %c0_31 = arith.constant 0 : index
    %30 = vector.load %arg13[%c48, %c0_31] : memref<144x286xf32, #tpu.memory_space<vmem>>, vector<8x286xf32>
    tpu.vector_store %arg13[%c48, %c0_31], %29 {strides = array<i32>} : memref<144x286xf32, #tpu.memory_space<vmem>>, vector<8x286xf32>,
    %c0_32 = arith.constant 0 : index
    %c0_33 = arith.constant 0 : index
    %c18_34 = arith.constant 18 : index
    %31 = vector.load %arg5[%c0_32, %c0_33, %c18_34] : memref<1x8x324xf32, #tpu.memory_space<vmem>>, vector<1x8x286xf32>
    %32 = vector.shape_cast %31 : vector<1x8x286xf32> to vector<8x286xf32>
    %c56 = arith.constant 56 : index
    %c0_35 = arith.constant 0 : index
    %33 = vector.load %arg13[%c56, %c0_35] : memref<144x286xf32, #tpu.memory_space<vmem>>, vector<8x286xf32>
    tpu.vector_store %arg13[%c56, %c0_35], %32 {strides = array<i32>} : memref<144x286xf32, #tpu.memory_space<vmem>>, vector<8x286xf32>,
    %c0_36 = arith.constant 0 : index
    %c19 = arith.constant 19 : index
    %34 = vector.load %arg12[%c0_36, %c19] : memref<8x324xf32, #tpu.memory_space<vmem>>, vector<8x286xf32>
    %c64 = arith.constant 64 : index
    %c0_37 = arith.constant 0 : index
    %35 = vector.load %arg13[%c64, %c0_37] : memref<144x286xf32, #tpu.memory_space<vmem>>, vector<8x286xf32>
    tpu.vector_store %arg13[%c64, %c0_37], %34 {strides = array<i32>} : memref<144x286xf32, #tpu.memory_space<vmem>>, vector<8x286xf32>,
    %c0_38 = arith.constant 0 : index
    %c0_39 = arith.constant 0 : index
    %c19_40 = arith.constant 19 : index
    %36 = vector.load %arg5[%c0_38, %c0_39, %c19_40] : memref<1x8x324xf32, #tpu.memory_space<vmem>>, vector<1x8x286xf32>
    %37 = vector.shape_cast %36 : vector<1x8x286xf32> to vector<8x286xf32>
    %c72 = arith.constant 72 : index
    %c0_41 = arith.constant 0 : index
    %38 = vector.load %arg13[%c72, %c0_41] : memref<144x286xf32, #tpu.memory_space<vmem>>, vector<8x286xf32>
    tpu.vector_store %arg13[%c72, %c0_41], %37 {strides = array<i32>} : memref<144x286xf32, #tpu.memory_space<vmem>>, vector<8x286xf32>,
    %c0_42 = arith.constant 0 : index
    %c20 = arith.constant 20 : index
    %39 = vector.load %arg12[%c0_42, %c20] : memref<8x324xf32, #tpu.memory_space<vmem>>, vector<8x286xf32>
    %c80 = arith.constant 80 : index
    %c0_43 = arith.constant 0 : index
    %40 = vector.load %arg13[%c80, %c0_43] : memref<144x286xf32, #tpu.memory_space<vmem>>, vector<8x286xf32>
    tpu.vector_store %arg13[%c80, %c0_43], %39 {strides = array<i32>} : memref<144x286xf32, #tpu.memory_space<vmem>>, vector<8x286xf32>,
    %c0_44 = arith.constant 0 : index
    %c0_45 = arith.constant 0 : index
    %c20_46 = arith.constant 20 : index
    %41 = vector.load %arg5[%c0_44, %c0_45, %c20_46] : memref<1x8x324xf32, #tpu.memory_space<vmem>>, vector<1x8x286xf32>
    %42 = vector.shape_cast %41 : vector<1x8x286xf32> to vector<8x286xf32>
    %c88 = arith.constant 88 : index
    %c0_47 = arith.constant 0 : index
    %43 = vector.load %arg13[%c88, %c0_47] : memref<144x286xf32, #tpu.memory_space<vmem>>, vector<8x286xf32>
    tpu.vector_store %arg13[%c88, %c0_47], %42 {strides = array<i32>} : memref<144x286xf32, #tpu.memory_space<vmem>>, vector<8x286xf32>,
    %c0_48 = arith.constant 0 : index
    %c36 = arith.constant 36 : index
    %44 = vector.load %arg12[%c0_48, %c36] : memref<8x324xf32, #tpu.memory_space<vmem>>, vector<8x286xf32>
    %c96 = arith.constant 96 : index
    %c0_49 = arith.constant 0 : index
    %45 = vector.load %arg13[%c96, %c0_49] : memref<144x286xf32, #tpu.memory_space<vmem>>, vector<8x286xf32>
    tpu.vector_store %arg13[%c96, %c0_49], %44 {strides = array<i32>} : memref<144x286xf32, #tpu.memory_space<vmem>>, vector<8x286xf32>,
    %c0_50 = arith.constant 0 : index
    %c0_51 = arith.constant 0 : index
    %c36_52 = arith.constant 36 : index
    %46 = vector.load %arg5[%c0_50, %c0_51, %c36_52] : memref<1x8x324xf32, #tpu.memory_space<vmem>>, vector<1x8x286xf32>
    %47 = vector.shape_cast %46 : vector<1x8x286xf32> to vector<8x286xf32>
    %c104 = arith.constant 104 : index
    %c0_53 = arith.constant 0 : index
    %48 = vector.load %arg13[%c104, %c0_53] : memref<144x286xf32, #tpu.memory_space<vmem>>, vector<8x286xf32>
    tpu.vector_store %arg13[%c104, %c0_53], %47 {strides = array<i32>} : memref<144x286xf32, #tpu.memory_space<vmem>>, vector<8x286xf32>,
    %c0_54 = arith.constant 0 : index
    %c37 = arith.constant 37 : index
    %49 = vector.load %arg12[%c0_54, %c37] : memref<8x324xf32, #tpu.memory_space<vmem>>, vector<8x286xf32>
    %c112 = arith.constant 112 : index
    %c0_55 = arith.constant 0 : index
    %50 = vector.load %arg13[%c112, %c0_55] : memref<144x286xf32, #tpu.memory_space<vmem>>, vector<8x286xf32>
    tpu.vector_store %arg13[%c112, %c0_55], %49 {strides = array<i32>} : memref<144x286xf32, #tpu.memory_space<vmem>>, vector<8x286xf32>,
    %c0_56 = arith.constant 0 : index
    %c0_57 = arith.constant 0 : index
    %c37_58 = arith.constant 37 : index
    %51 = vector.load %arg5[%c0_56, %c0_57, %c37_58] : memref<1x8x324xf32, #tpu.memory_space<vmem>>, vector<1x8x286xf32>
    %52 = vector.shape_cast %51 : vector<1x8x286xf32> to vector<8x286xf32>
    %c120 = arith.constant 120 : index
    %c0_59 = arith.constant 0 : index
    %53 = vector.load %arg13[%c120, %c0_59] : memref<144x286xf32, #tpu.memory_space<vmem>>, vector<8x286xf32>
    tpu.vector_store %arg13[%c120, %c0_59], %52 {strides = array<i32>} : memref<144x286xf32, #tpu.memory_space<vmem>>, vector<8x286xf32>,
    %c0_60 = arith.constant 0 : index
    %c38 = arith.constant 38 : index
    %54 = vector.load %arg12[%c0_60, %c38] : memref<8x324xf32, #tpu.memory_space<vmem>>, vector<8x286xf32>
    %c128 = arith.constant 128 : index
    %c0_61 = arith.constant 0 : index
    %55 = vector.load %arg13[%c128, %c0_61] : memref<144x286xf32, #tpu.memory_space<vmem>>, vector<8x286xf32>
    tpu.vector_store %arg13[%c128, %c0_61], %54 {strides = array<i32>} : memref<144x286xf32, #tpu.memory_space<vmem>>, vector<8x286xf32>,
    %c0_62 = arith.constant 0 : index
    %c0_63 = arith.constant 0 : index
    %c38_64 = arith.constant 38 : index
    %56 = vector.load %arg5[%c0_62, %c0_63, %c38_64] : memref<1x8x324xf32, #tpu.memory_space<vmem>>, vector<1x8x286xf32>
    %57 = vector.shape_cast %56 : vector<1x8x286xf32> to vector<8x286xf32>
    %c136 = arith.constant 136 : index
    %c0_65 = arith.constant 0 : index
    %58 = vector.load %arg13[%c136, %c0_65] : memref<144x286xf32, #tpu.memory_space<vmem>>, vector<8x286xf32>
    tpu.vector_store %arg13[%c136, %c0_65], %57 {strides = array<i32>} : memref<144x286xf32, #tpu.memory_space<vmem>>, vector<8x286xf32>,
    %c0_66 = arith.constant 0 : index
    %c0_67 = arith.constant 0 : index
    %59 = vector.load %arg6[%c0_66, %c0_67] : memref<8x144xf32, #tpu.memory_space<vmem>>, vector<8x144xf32>
    %c0_68 = arith.constant 0 : index
    %c0_69 = arith.constant 0 : index
    %60 = vector.load %arg13[%c0_68, %c0_69] : memref<144x286xf32, #tpu.memory_space<vmem>>, vector<144x286xf32>
    %cst_70 = arith.constant dense<0.000000e+00> : vector<8x286xf32>
    %61 = tpu.matmul %59, %60, %cst_70 {dimension_numbers = #tpu.dot_dimension_numbers<[1], [0], [0], [1], [0, 0, 1, 1], [], []>} : vector<8x144xf32>, vector<144x286xf32>, vector<8x286xf32> -> vector<8x286xf32>
    %c0_71 = arith.constant 0 : index
    %c0_72 = arith.constant 0 : index
    %62 = vector.load %arg7[%c0_71, %c0_72] : memref<8x1xf32, #tpu.memory_space<vmem>>, vector<8x1xf32>
    %63 = vector.broadcast %62 : vector<8x1xf32> to vector<8x286xf32>
    %64 = arith.addf %61, %63 : vector<8x286xf32>
    %c0_73 = arith.constant 0 : index
    %c0_74 = arith.constant 0 : index
    %65 = vector.load %arg8[%c0_73, %c0_74] : memref<1x286xf32, #tpu.memory_space<vmem>>, vector<1x286xf32>
    %66 = vector.broadcast %65 : vector<1x286xf32> to vector<8x286xf32>
    %67 = arith.mulf %64, %66 : vector<8x286xf32>
    %c0_75 = arith.constant 0 : index
    %c0_76 = arith.constant 0 : index
    %c0_77 = arith.constant 0 : index
    %68 = vector.load %arg9[%c0_75, %c0_76, %c0_77] : memref<1x8x286xf32, #tpu.memory_space<vmem>>, vector<1x8x286xf32>
    %69 = vector.shape_cast %68 : vector<1x8x286xf32> to vector<8x286xf32>
    %70 = vector.shape_cast %67 : vector<8x286xf32> to vector<1x8x286xf32>
    tpu.vector_store %arg9[%c0_75, %c0_76, %c0_77], %70 {strides = array<i32>} : memref<1x8x286xf32, #tpu.memory_space<vmem>>, vector<1x8x286xf32>,
    %cst_78 = arith.constant dense<0.000000e+00> : vector<8xf32>
    %71 = vector.multi_reduction <add>, %67, %cst_78 [1] : vector<8x286xf32> to vector<8xf32>
    %72 = vector.shape_cast %71 : vector<8xf32> to vector<8x1xf32>
    %c0_79 = arith.constant 0 : index
    %c0_80 = arith.constant 0 : index
    %c0_81 = arith.constant 0 : index
    %73 = vector.load %arg10[%c0_79, %c0_80, %c0_81] : memref<1x8x1xf32, #tpu.memory_space<vmem>>, vector<1x8x1xf32>
    %74 = vector.shape_cast %73 : vector<1x8x1xf32> to vector<8x1xf32>
    %75 = vector.shape_cast %72 : vector<8x1xf32> to vector<1x8x1xf32>
    tpu.vector_store %arg10[%c0_79, %c0_80, %c0_81], %75 {strides = array<i32>} : memref<1x8x1xf32, #tpu.memory_space<vmem>>, vector<1x8x1xf32>,
    %76 = arith.mulf %67, %67 : vector<8x286xf32>
    %cst_82 = arith.constant dense<0.000000e+00> : vector<8xf32>
    %77 = vector.multi_reduction <add>, %76, %cst_82 [1] : vector<8x286xf32> to vector<8xf32>
    %78 = vector.shape_cast %77 : vector<8xf32> to vector<8x1xf32>
    %c0_83 = arith.constant 0 : index
    %c0_84 = arith.constant 0 : index
    %c0_85 = arith.constant 0 : index
    %79 = vector.load %arg11[%c0_83, %c0_84, %c0_85] : memref<1x8x1xf32, #tpu.memory_space<vmem>>, vector<1x8x1xf32>
    %80 = vector.shape_cast %79 : vector<1x8x1xf32> to vector<8x1xf32>
    %81 = vector.shape_cast %78 : vector<8x1xf32> to vector<1x8x1xf32>
    tpu.vector_store %arg11[%c0_83, %c0_84, %c0_85], %81 {strides = array<i32>} : memref<1x8x1xf32, #tpu.memory_space<vmem>>, vector<1x8x1xf32>,
    return
  }
  func.func @transform_0(%arg0: i32) -> (i32, i32, i32) {
    %c0_i32 = arith.constant 0 : i32
    %c0_i32_0 = arith.constant 0 : i32
    %c0_i32_1 = arith.constant 0 : i32
    return %arg0, %c0_i32, %c0_i32_0 : i32, i32, i32
  }
  func.func @transform_1(%arg0: i32) -> (i32, i32) {
    %c0_i32 = arith.constant 0 : i32
    %c0_i32_0 = arith.constant 0 : i32
    %c0_i32_1 = arith.constant 0 : i32
    return %c0_i32, %c0_i32_0 : i32, i32
  }
  func.func @transform_2(%arg0: i32) -> (i32, i32) {
    %c0_i32 = arith.constant 0 : i32
    %c0_i32_0 = arith.constant 0 : i32
    %c0_i32_1 = arith.constant 0 : i32
    return %c0_i32, %c0_i32_0 : i32, i32
  }
  func.func @transform_3(%arg0: i32) -> (i32, i32) {
    %c0_i32 = arith.constant 0 : i32
    %c0_i32_0 = arith.constant 0 : i32
    %c0_i32_1 = arith.constant 0 : i32
    return %c0_i32, %c0_i32_0 : i32, i32
  }
  func.func @transform_4(%arg0: i32) -> (i32, i32, i32) {
    %c0_i32 = arith.constant 0 : i32
    %c0_i32_0 = arith.constant 0 : i32
    %c0_i32_1 = arith.constant 0 : i32
    return %arg0, %c0_i32, %c0_i32_0 : i32, i32, i32
  }
  func.func @transform_5(%arg0: i32) -> (i32, i32) {
    %c0_i32 = arith.constant 0 : i32
    %c0_i32_0 = arith.constant 0 : i32
    %c0_i32_1 = arith.constant 0 : i32
    return %c0_i32, %c0_i32_0 : i32, i32
  }
  func.func @transform_6(%arg0: i32) -> (i32, i32) {
    %c0_i32 = arith.constant 0 : i32
    %c0_i32_0 = arith.constant 0 : i32
    %c0_i32_1 = arith.constant 0 : i32
    return %c0_i32, %c0_i32_0 : i32, i32
  }
  func.func @transform_7(%arg0: i32) -> (i32, i32) {
    %c0_i32 = arith.constant 0 : i32
    %c0_i32_0 = arith.constant 0 : i32
    %c0_i32_1 = arith.constant 0 : i32
    return %c0_i32, %c0_i32_0 : i32, i32
  }
  func.func @transform_8(%arg0: i32) -> (i32, i32, i32) {
    %c0_i32 = arith.constant 0 : i32
    %c0_i32_0 = arith.constant 0 : i32
    %c0_i32_1 = arith.constant 0 : i32
    return %arg0, %c0_i32, %c0_i32_0 : i32, i32, i32
  }
  func.func @transform_9(%arg0: i32) -> (i32, i32, i32) {
    %c0_i32 = arith.constant 0 : i32
    %c0_i32_0 = arith.constant 0 : i32
    %c0_i32_1 = arith.constant 0 : i32
    return %arg0, %c0_i32, %c0_i32_0 : i32, i32, i32
  }
  func.func @transform_10(%arg0: i32) -> (i32, i32, i32) {
    %c0_i32 = arith.constant 0 : i32
    %c0_i32_0 = arith.constant 0 : i32
    %c0_i32_1 = arith.constant 0 : i32
    return %arg0, %c0_i32, %c0_i32_0 : i32, i32, i32
  }
}

</mosaic_0001>

<llo_original>
// kernel: up_forward.5
$region0: #{up_forward.5}
  #allocation0 [shape = 'u32[]', space=smem, size = 0x4, offset = 0x4, fixed_abs, tag = 'smem constant byte address 0x4 - core index']
  #allocation1 [shape = 'u32[144,128]{1,0:T(1,128)}', space=vmem, size = 0x12000, scoped, tag = 'internal scratch']
  %s0 = inlined_call_operand.vmem [shape: f32[2,8,286], index: 0, kind: input, shape index: {}]
  %s1 = inlined_call_operand.vmem [shape: f32[8,1], index: 1, kind: input, shape index: {}]
  %s2 = inlined_call_operand.vmem [shape: f32[8,1], index: 2, kind: input, shape index: {}]
  %s3 = inlined_call_operand.vmem [shape: f32[2,8,286], index: 3, kind: output, shape index: {}]
  %s4 = sld [smem:[#allocation0]]
  $region45: #{up_forward.5} parent=0
    _
  %s6 = ssub.s32 1, %s4
  %s7 = scalar_select 0, %s6, %s4
  loop: start=0, step=1, limit=4
  $region2: #{up_forward.5} parent=0 // loop_pre_header
    _
  $region3: #{up_forward.5} parent=0 // loop_header
    %s9 = sphi 0, %s13
    %p10 = scmp.ge.s32.totalorder %s9, 4
    %s19 = sphi 0, %s21
    %s22 = sphi 0, %s19
    %s23 = sphi 0, %s22
    %s39 = sphi 0, %s23
    %s43 = sphi 0, %s43
    %s45 = sphi 0, %s43
    %s46 = sphi 0, %s45
    %s60 = sphi 0, %s46
    %s64 = sphi 0, %s64
    %s66 = sphi 0, %s64
    %s67 = sphi 0, %s66
    %s81 = sphi 0, %s67
    %s87 = sphi 0, %s89
    %s90 = sphi 0, %s87
    %s91 = sphi 0, %s90
    %s107 = sphi 0, %s91
  $region4: #{up_forward.5} parent=0 // loop_header_branch
    %12 = sbr.rel (%p10) target = $region8
  $region5: #{up_forward.5} parent=0 // loop_body
    %s14 = ssub.s32 %s9, 1
    %s15 = ssub.s32 %s9, 2
    %s16 = sadd.s32 %s9, 1
    %s17 = ssub.s32 %s9, %s16
    %p18 = scmp.eq.s32.totalorder %s17, 0
    %s20 = sadd.s32 %s19, 1
    %s21 = scalar_select %p18, %s19, %s20
    %p24 = pneg %p18
    %p25 = scmp.eq.s32.totalorder %s9, 1
    %p26 = por %p24, %p25
    %p27 = scmp.ne.s32.totalorder %s19, %s22
    %p28 = scmp.eq.s32.totalorder %s9, 0
    %p29 = por %p27, %p28
    %p30 = scmp.ne.s32.totalorder %s19, %s22
    %p31 = scmp.eq.s32.totalorder %s14, 1
    %p32 = por %p30, %p31
    %p33 = scmp.ne.s32.totalorder %s22, %s23
    %p34 = scmp.eq.s32.totalorder %s14, 0
    %p35 = por %p33, %p34
    %p36 = scmp.ne.s32.totalorder %s22, %s23
    %p37 = scmp.eq.s32.totalorder %s15, 1
    %p38 = por %p36, %p37
    %p40 = scmp.ne.s32.totalorder %s23, %s39
    %p41 = scmp.eq.s32.totalorder %s15, 0
    %p42 = por %p40, %p41
    %s44 = sadd.s32 %s43, 1
    %p47 = scmp.eq.s32.totalorder %s9, 1
    %p48 = scmp.ne.s32.totalorder %s43, %s45
    %p49 = scmp.eq.s32.totalorder %s9, 0
    %p50 = por %p48, %p49
    %p51 = scmp.ne.s32.totalorder %s43, %s45
    %p52 = scmp.eq.s32.totalorder %s14, 1
    %p53 = por %p51, %p52
    %p54 = scmp.ne.s32.totalorder %s45, %s46
    %p55 = scmp.eq.s32.totalorder %s14, 0
    %p56 = por %p54, %p55
    %p57 = scmp.ne.s32.totalorder %s45, %s46
    %p58 = scmp.eq.s32.totalorder %s15, 1
    %p59 = por %p57, %p58
    %p61 = scmp.ne.s32.totalorder %s46, %s60
    %p62 = scmp.eq.s32.totalorder %s15, 0
    %p63 = por %p61, %p62
    %s65 = sadd.s32 %s64, 1
    %p68 = scmp.eq.s32.totalorder %s9, 1
    %p69 = scmp.ne.s32.totalorder %s64, %s66
    %p70 = scmp.eq.s32.totalorder %s9, 0
    %p71 = por %p69, %p70
    %p72 = scmp.ne.s32.totalorder %s64, %s66
    %p73 = scmp.eq.s32.totalorder %s14, 1
    %p74 = por %p72, %p73
    %p75 = scmp.ne.s32.totalorder %s66, %s67
    %p76 = scmp.eq.s32.totalorder %s14, 0
    %p77 = por %p75, %p76
    %p78 = scmp.ne.s32.totalorder %s66, %s67
    %p79 = scmp.eq.s32.totalorder %s15, 1
    %p80 = por %p78, %p79
    %p82 = scmp.ne.s32.totalorder %s67, %s81
    %p83 = scmp.eq.s32.totalorder %s15, 0
    %p84 = por %p82, %p83
    %s85 = ssub.s32 %s9, %s16
    %p86 = scmp.eq.s32.totalorder %s85, 0
    %s88 = sadd.s32 %s87, 1
    %s89 = scalar_select %p86, %s87, %s88
    %p92 = pneg %p86
    %p93 = scmp.eq.s32.totalorder %s9, 1
    %p94 = por %p92, %p93
    %p95 = scmp.ne.s32.totalorder %s87, %s90
    %p96 = scmp.eq.s32.totalorder %s9, 0
    %p97 = por %p95, %p96
    %p98 = scmp.ne.s32.totalorder %s87, %s90
    %p99 = scmp.eq.s32.totalorder %s14, 1
    %p100 = por %p98, %p99
    %p101 = scmp.ne.s32.totalorder %s90, %s91
    %p102 = scmp.eq.s32.totalorder %s14, 0
    %p103 = por %p101, %p102
    %p104 = scmp.ne.s32.totalorder %s90, %s91
    %p105 = scmp.eq.s32.totalorder %s15, 1
    %p106 = por %p104, %p105
    %p108 = scmp.ne.s32.totalorder %s91, %s107
    %p109 = scmp.eq.s32.totalorder %s15, 0
    %p110 = por %p108, %p109
    %p111 = scmp.le.s32.totalorder 1, %s9
    %p112 = scmp.lt.s32.totalorder %s9, 3
    %p113 = pnand %p111, %p112
    %p114 = pneg %p113
    // Predicated region
    $region9: #{up_forward.5} parent=5 // pred_check
      _
    $region10: #{up_forward.5} parent=5 // pred_check_branch
      %116 = sbr.rel (%p113) target = $region12
    $region11: #{up_forward.5} parent=5 // pred_region
      %s117 = ssub.s32 %s9, 1
      // Predicated region
      $region13: #{up_forward.5} parent=11 // pred_check
        %p118 = pneg %p56
      $region14: #{up_forward.5} parent=11 // pred_check_branch
        %120 = sbr.rel (%p118) target = $region16
      $region15: #{up_forward.5} parent=11 // pred_region
        _
      $region16: #{up_forward.5} parent=11 // pred_fallthru
        _
      // Predicated region
      $region17: #{up_forward.5} parent=11 // pred_check
        %p121 = pneg %p77
      $region18: #{up_forward.5} parent=11 // pred_check_branch
        %123 = sbr.rel (%p121) target = $region20
      $region19: #{up_forward.5} parent=11 // pred_region
        _
      $region20: #{up_forward.5} parent=11 // pred_fallthru
        _
    $region12: #{up_forward.5} parent=5 // pred_fallthru
      _
    %p124 = scmp.lt.s32.totalorder %s9, 2
    // Predicated region
    $region21: #{up_forward.5} parent=5 // pred_check
      %p125 = pneg %p124
    $region22: #{up_forward.5} parent=5 // pred_check_branch
      %127 = sbr.rel (%p125) target = $region24
    $region23: #{up_forward.5} parent=5 // pred_region
      // Predicated region
      $region25: #{up_forward.5} parent=23 // pred_check
        %p128 = pneg %p29
      $region26: #{up_forward.5} parent=23 // pred_check_branch
        %130 = sbr.rel (%p128) target = $region28
      $region27: #{up_forward.5} parent=23 // pred_region
        %p131 = scmp.lt.s32.totalorder %s9, 1
        %s132 = scalar_select %p131, %s9, 1
        %s133 = smul.addr %s132, 3
        %s134 = smul.addr %s133, 8
        %s135 = scalar_lea.vmem %s0, %s134
      $region28: #{up_forward.5} parent=23 // pred_fallthru
        _
    $region24: #{up_forward.5} parent=5 // pred_fallthru
      _
    %p136 = scmp.le.s32.totalorder 1, %s9
    %p137 = scmp.lt.s32.totalorder %s9, 3
    %p138 = pnand %p136, %p137
    %p139 = pneg %p138
    // Predicated region
    $region29: #{up_forward.5} parent=5 // pred_check
      _
    $region30: #{up_forward.5} parent=5 // pred_check_branch
      %141 = sbr.rel (%p138) target = $region32
    $region31: #{up_forward.5} parent=5 // pred_region
      %s142 = ssub.s32 %s9, 1
      %p143 = scmp.lt.s32.totalorder %s14, 1
      %s144 = scalar_select %p143, %s14, 1
      %s145 = smul.addr %s144, 3
      %s146 = smul.addr %s145, 8
      %s147 = scalar_lea.vmem %s0, %s146
      %p148 = pneg %p35
      %p149 = pneg %p32
      %p150 = pneg %p56
      %p151 = pneg %p53
      %p152 = pneg %p77
      %p153 = pneg %p74
      %p154 = pneg %p103
      %p155 = pneg %p100
      %p156 = scmp.lt.s32.totalorder %s14, 1
      %s157 = scalar_select %p156, %s14, 1
      %s158 = smul.addr %s157, 3
      %s159 = smul.addr %s158, 8
      %s160 = scalar_lea.vmem %s3, %s159
      %p161 = scmp.lt.s32.totalorder %s14, 1
      %s162 = scalar_select %p161, %s14, 1
      %s163 = smul.addr %s162, 3
      %s164 = smul.addr %s163, 8
      %s165 = scalar_lea.vmem %s0, %s164
      %p166 = scmp.lt.s32.totalorder %s14, 1
      %s167 = scalar_select %p166, %s14, 1
      %s168 = smul.addr %s167, 3
      %s169 = smul.addr %s168, 8
      %s170 = scalar_lea.vmem %s3, %s169
      %v171 = vld [vmem:[%s165] sm:$0xff]
      %v172 = vld [vmem:[%s165 + $0x8] sm:$0xff]
      %v173 = vld [vmem:[%s165 + $0x10] sm:$0xff]
      %v174 = vld [vmem:[%s1] sm:$0xff]
      %176 = vset.pattern.permute.xlu0 0
      %177 = vperm.xlu0 %176, %v174
      %v178 = vpop.permute.xlu0 %177
      %v180 = vmul.f32 %v171, %v178
      %v181 = vmul.f32 %v172, %v178
      %v182 = vmul.f32 %v173, %v178
      %v183 = vld [vmem:[%s2] sm:$0xff]
      %185 = vset.pattern.permute.xlu0 0
      %186 = vperm.xlu0 %185, %v183
      %v187 = vpop.permute.xlu0 %186
      %v189 = vadd.f32 %v180, %v187
      %v190 = vadd.f32 %v181, %v187
      %v191 = vadd.f32 %v182, %v187
      %v192 = vmax.f32 %v189, 0.0
      %v193 = vmax.f32 %v190, 0.0
      %v194 = vmax.f32 %v191, 0.0
      %195 = vst [vmem:[%s170] sm:$0xff] %v192
      %196 = vst [vmem:[%s170 + $0x8] sm:$0xff] %v193
      %vm197 = vcmask 244736
      %198 = vst.msk [vmem:[%s170 + $0x10] sm:$0xff] %vm197, %v194
      %p199 = scmp.lt.s32.totalorder %s14, 1
      %s200 = scalar_select %p199, %s14, 1
      %s201 = smul.addr %s200, 3
      %s202 = smul.addr %s201, 8
      %s203 = scalar_lea.vmem %s3, %s202
      // Predicated region
      $region33: #{up_forward.5} parent=31 // pred_check
        %p204 = pneg %p100
      $region34: #{up_forward.5} parent=31 // pred_check_branch
        %206 = sbr.rel (%p204) target = $region36
      $region35: #{up_forward.5} parent=31 // pred_region
        _
      $region36: #{up_forward.5} parent=31 // pred_fallthru
        _
    $region32: #{up_forward.5} parent=5 // pred_fallthru
      _
    %p207 = scmp.le.s32.totalorder 2, %s9
    // Predicated region
    $region37: #{up_forward.5} parent=5 // pred_check
      %p208 = pneg %p207
    $region38: #{up_forward.5} parent=5 // pred_check_branch
      %210 = sbr.rel (%p208) target = $region40
    $region39: #{up_forward.5} parent=5 // pred_region
      %s211 = ssub.s32 %s9, 2
      // Predicated region
      $region41: #{up_forward.5} parent=39 // pred_check
        %p212 = pneg %p106
      $region42: #{up_forward.5} parent=39 // pred_check_branch
        %214 = sbr.rel (%p212) target = $region44
      $region43: #{up_forward.5} parent=39 // pred_region
        %p215 = scmp.lt.s32.totalorder %s15, 1
        %s216 = scalar_select %p215, %s15, 1
        %s217 = smul.addr %s216, 3
        %s218 = smul.addr %s217, 8
        %s219 = scalar_lea.vmem %s3, %s218
      $region44: #{up_forward.5} parent=39 // pred_fallthru
        _
    $region40: #{up_forward.5} parent=5 // pred_fallthru
      _
  $region6: #{up_forward.5} parent=0 // loop_footer
    %s13 = sadd.s32 1, %s9
  $region7: #{up_forward.5} parent=0 // loop_footer_branch
    %8 = sbr.rel target = $region3
  $region8: #{up_forward.5} parent=0 // loop_exit
    _

// kernel: up_forward.3
$region0: #{up_forward.3}
  #allocation0 [shape = 'u32[]', space=smem, size = 0x4, offset = 0x4, fixed_abs, tag = 'smem constant byte address 0x4 - core index']
  #allocation1 [shape = 'u32[144,128]{1,0:T(1,128)}', space=vmem, size = 0x12000, scoped, tag = 'internal scratch']
  #allocation2 [shape = 'f32[72,324]{1,0:T(8,128)}', space=vmem, size = 0x1b000, scoped, tag = 'scratch operand']
  %s0 = inlined_call_operand.vmem [shape: f32[2,8,362], index: 0, kind: input, shape index: {}]
  %s1 = inlined_call_operand.vmem [shape: f32[8,72], index: 1, kind: input, shape index: {}]
  %s2 = inlined_call_operand.vmem [shape: f32[8,1], index: 2, kind: input, shape index: {}]
  %s3 = inlined_call_operand.vmem [shape: f32[1,324], index: 3, kind: input, shape index: {}]
  %s4 = inlined_call_operand.vmem [shape: f32[2,8,324], index: 4, kind: output, shape index: {0}]
  %s5 = inlined_call_operand.vmem [shape: f32[2,8,1], index: 5, kind: output, shape index: {1}]
  %s6 = inlined_call_operand.vmem [shape: f32[2,8,1], index: 6, kind: output, shape index: {2}]
  %7 = xla_tuple %s4, %s5, %s6
  %s8 = sld [smem:[#allocation0]]
  $region65: #{up_forward.3} parent=0
    _
  %s10 = ssub.s32 1, %s8
  %s11 = scalar_select 0, %s10, %s8
  loop: start=0, step=1, limit=4
  $region2: #{up_forward.3} parent=0 // loop_pre_header
    _
  $region3: #{up_forward.3} parent=0 // loop_header
    %s13 = sphi 0, %s17
    %p14 = scmp.ge.s32.totalorder %s13, 4
    %s23 = sphi 0, %s25
    %s26 = sphi 0, %s23
    %s27 = sphi 0, %s26
    %s43 = sphi 0, %s27
    %s47 = sphi 0, %s47
    %s49 = sphi 0, %s47
    %s50 = sphi 0, %s49
    %s64 = sphi 0, %s50
    %s68 = sphi 0, %s68
    %s70 = sphi 0, %s68
    %s71 = sphi 0, %s70
    %s85 = sphi 0, %s71
    %s89 = sphi 0, %s89
    %s91 = sphi 0, %s89
    %s92 = sphi 0, %s91
    %s106 = sphi 0, %s92
    %s112 = sphi 0, %s114
    %s115 = sphi 0, %s112
    %s116 = sphi 0, %s115
    %s132 = sphi 0, %s116
    %s138 = sphi 0, %s140
    %s141 = sphi 0, %s138
    %s142 = sphi 0, %s141
    %s158 = sphi 0, %s142
    %s164 = sphi 0, %s166
    %s167 = sphi 0, %s164
    %s168 = sphi 0, %s167
    %s184 = sphi 0, %s168
  $region4: #{up_forward.3} parent=0 // loop_header_branch
    %16 = sbr.rel (%p14) target = $region8
  $region5: #{up_forward.3} parent=0 // loop_body
    %s18 = ssub.s32 %s13, 1
    %s19 = ssub.s32 %s13, 2
    %s20 = sadd.s32 %s13, 1
    %s21 = ssub.s32 %s13, %s20
    %p22 = scmp.eq.s32.totalorder %s21, 0
    %s24 = sadd.s32 %s23, 1
    %s25 = scalar_select %p22, %s23, %s24
    %p28 = pneg %p22
    %p29 = scmp.eq.s32.totalorder %s13, 1
    %p30 = por %p28, %p29
    %p31 = scmp.ne.s32.totalorder %s23, %s26
    %p32 = scmp.eq.s32.totalorder %s13, 0
    %p33 = por %p31, %p32
    %p34 = scmp.ne.s32.totalorder %s23, %s26
    %p35 = scmp.eq.s32.totalorder %s18, 1
    %p36 = por %p34, %p35
    %p37 = scmp.ne.s32.totalorder %s26, %s27
    %p38 = scmp.eq.s32.totalorder %s18, 0
    %p39 = por %p37, %p38
    %p40 = scmp.ne.s32.totalorder %s26, %s27
    %p41 = scmp.eq.s32.totalorder %s19, 1
    %p42 = por %p40, %p41
    %p44 = scmp.ne.s32.totalorder %s27, %s43
    %p45 = scmp.eq.s32.totalorder %s19, 0
    %p46 = por %p44, %p45
    %s48 = sadd.s32 %s47, 1
    %p51 = scmp.eq.s32.totalorder %s13, 1
    %p52 = scmp.ne.s32.totalorder %s47, %s49
    %p53 = scmp.eq.s32.totalorder %s13, 0
    %p54 = por %p52, %p53
    %p55 = scmp.ne.s32.totalorder %s47, %s49
    %p56 = scmp.eq.s32.totalorder %s18, 1
    %p57 = por %p55, %p56
    %p58 = scmp.ne.s32.totalorder %s49, %s50
    %p59 = scmp.eq.s32.totalorder %s18, 0
    %p60 = por %p58, %p59
    %p61 = scmp.ne.s32.totalorder %s49, %s50
    %p62 = scmp.eq.s32.totalorder %s19, 1
    %p63 = por %p61, %p62
    %p65 = scmp.ne.s32.totalorder %s50, %s64
    %p66 = scmp.eq.s32.totalorder %s19, 0
    %p67 = por %p65, %p66
    %s69 = sadd.s32 %s68, 1
    %p72 = scmp.eq.s32.totalorder %s13, 1
    %p73 = scmp.ne.s32.totalorder %s68, %s70
    %p74 = scmp.eq.s32.totalorder %s13, 0
    %p75 = por %p73, %p74
    %p76 = scmp.ne.s32.totalorder %s68, %s70
    %p77 = scmp.eq.s32.totalorder %s18, 1
    %p78 = por %p76, %p77
    %p79 = scmp.ne.s32.totalorder %s70, %s71
    %p80 = scmp.eq.s32.totalorder %s18, 0
    %p81 = por %p79, %p80
    %p82 = scmp.ne.s32.totalorder %s70, %s71
    %p83 = scmp.eq.s32.totalorder %s19, 1
    %p84 = por %p82, %p83
    %p86 = scmp.ne.s32.totalorder %s71, %s85
    %p87 = scmp.eq.s32.totalorder %s19, 0
    %p88 = por %p86, %p87
    %s90 = sadd.s32 %s89, 1
    %p93 = scmp.eq.s32.totalorder %s13, 1
    %p94 = scmp.ne.s32.totalorder %s89, %s91
    %p95 = scmp.eq.s32.totalorder %s13, 0
    %p96 = por %p94, %p95
    %p97 = scmp.ne.s32.totalorder %s89, %s91
    %p98 = scmp.eq.s32.totalorder %s18, 1
    %p99 = por %p97, %p98
    %p100 = scmp.ne.s32.totalorder %s91, %s92
    %p101 = scmp.eq.s32.totalorder %s18, 0
    %p102 = por %p100, %p101
    %p103 = scmp.ne.s32.totalorder %s91, %s92
    %p104 = scmp.eq.s32.totalorder %s19, 1
    %p105 = por %p103, %p104
    %p107 = scmp.ne.s32.totalorder %s92, %s106
    %p108 = scmp.eq.s32.totalorder %s19, 0
    %p109 = por %p107, %p108
    %s110 = ssub.s32 %s13, %s20
    %p111 = scmp.eq.s32.totalorder %s110, 0
    %s113 = sadd.s32 %s112, 1
    %s114 = scalar_select %p111, %s112, %s113
    %p117 = pneg %p111
    %p118 = scmp.eq.s32.totalorder %s13, 1
    %p119 = por %p117, %p118
    %p120 = scmp.ne.s32.totalorder %s112, %s115
    %p121 = scmp.eq.s32.totalorder %s13, 0
    %p122 = por %p120, %p121
    %p123 = scmp.ne.s32.totalorder %s112, %s115
    %p124 = scmp.eq.s32.totalorder %s18, 1
    %p125 = por %p123, %p124
    %p126 = scmp.ne.s32.totalorder %s115, %s116
    %p127 = scmp.eq.s32.totalorder %s18, 0
    %p128 = por %p126, %p127
    %p129 = scmp.ne.s32.totalorder %s115, %s116
    %p130 = scmp.eq.s32.totalorder %s19, 1
    %p131 = por %p129, %p130
    %p133 = scmp.ne.s32.totalorder %s116, %s132
    %p134 = scmp.eq.s32.totalorder %s19, 0
    %p135 = por %p133, %p134
    %s136 = ssub.s32 %s13, %s20
    %p137 = scmp.eq.s32.totalorder %s136, 0
    %s139 = sadd.s32 %s138, 1
    %s140 = scalar_select %p137, %s138, %s139
    %p143 = pneg %p137
    %p144 = scmp.eq.s32.totalorder %s13, 1
    %p145 = por %p143, %p144
    %p146 = scmp.ne.s32.totalorder %s138, %s141
    %p147 = scmp.eq.s32.totalorder %s13, 0
    %p148 = por %p146, %p147
    %p149 = scmp.ne.s32.totalorder %s138, %s141
    %p150 = scmp.eq.s32.totalorder %s18, 1
    %p151 = por %p149, %p150
    %p152 = scmp.ne.s32.totalorder %s141, %s142
    %p153 = scmp.eq.s32.totalorder %s18, 0
    %p154 = por %p152, %p153
    %p155 = scmp.ne.s32.totalorder %s141, %s142
    %p156 = scmp.eq.s32.totalorder %s19, 1
    %p157 = por %p155, %p156
    %p159 = scmp.ne.s32.totalorder %s142, %s158
    %p160 = scmp.eq.s32.totalorder %s19, 0
    %p161 = por %p159, %p160
    %s162 = ssub.s32 %s13, %s20
    %p163 = scmp.eq.s32.totalorder %s162, 0
    %s165 = sadd.s32 %s164, 1
    %s166 = scalar_select %p163, %s164, %s165
    %p169 = pneg %p163
    %p170 = scmp.eq.s32.totalorder %s13, 1
    %p171 = por %p169, %p170
    %p172 = scmp.ne.s32.totalorder %s164, %s167
    %p173 = scmp.eq.s32.totalorder %s13, 0
    %p174 = por %p172, %p173
    %p175 = scmp.ne.s32.totalorder %s164, %s167
    %p176 = scmp.eq.s32.totalorder %s18, 1
    %p177 = por %p175, %p176
    %p178 = scmp.ne.s32.totalorder %s167, %s168
    %p179 = scmp.eq.s32.totalorder %s18, 0
    %p180 = por %p178, %p179
    %p181 = scmp.ne.s32.totalorder %s167, %s168
    %p182 = scmp.eq.s32.totalorder %s19, 1
    %p183 = por %p181, %p182
    %p185 = scmp.ne.s32.totalorder %s168, %s184
    %p186 = scmp.eq.s32.totalorder %s19, 0
    %p187 = por %p185, %p186
    %p188 = scmp.le.s32.totalorder 1, %s13
    %p189 = scmp.lt.s32.totalorder %s13, 3
    %p190 = pnand %p188, %p189
    %p191 = pneg %p190
    // Predicated region
    $region9: #{up_forward.3} parent=5 // pred_check
      _
    $region10: #{up_forward.3} parent=5 // pred_check_branch
      %193 = sbr.rel (%p190) target = $region12
    $region11: #{up_forward.3} parent=5 // pred_region
      %s194 = ssub.s32 %s13, 1
      // Predicated region
      $region13: #{up_forward.3} parent=11 // pred_check
        %p195 = pneg %p60
      $region14: #{up_forward.3} parent=11 // pred_check_branch
        %197 = sbr.rel (%p195) target = $region16
      $region15: #{up_forward.3} parent=11 // pred_region
        _
      $region16: #{up_forward.3} parent=11 // pred_fallthru
        _
      // Predicated region
      $region17: #{up_forward.3} parent=11 // pred_check
        %p198 = pneg %p81
      $region18: #{up_forward.3} parent=11 // pred_check_branch
        %200 = sbr.rel (%p198) target = $region20
      $region19: #{up_forward.3} parent=11 // pred_region
        _
      $region20: #{up_forward.3} parent=11 // pred_fallthru
        _
      // Predicated region
      $region21: #{up_forward.3} parent=11 // pred_check
        %p201 = pneg %p102
      $region22: #{up_forward.3} parent=11 // pred_check_branch
        %203 = sbr.rel (%p201) target = $region24
      $region23: #{up_forward.3} parent=11 // pred_region
        _
      $region24: #{up_forward.3} parent=11 // pred_fallthru
        _
    $region12: #{up_forward.3} parent=5 // pred_fallthru
      _
    %p204 = scmp.lt.s32.totalorder %s13, 2
    // Predicated region
    $region25: #{up_forward.3} parent=5 // pred_check
      %p205 = pneg %p204
    $region26: #{up_forward.3} parent=5 // pred_check_branch
      %207 = sbr.rel (%p205) target = $region28
    $region27: #{up_forward.3} parent=5 // pred_region
      // Predicated region
      $region29: #{up_forward.3} parent=27 // pred_check
        %p208 = pneg %p33
      $region30: #{up_forward.3} parent=27 // pred_check_branch
        %210 = sbr.rel (%p208) target = $region32
      $region31: #{up_forward.3} parent=27 // pred_region
        %p211 = scmp.lt.s32.totalorder %s13, 1
        %s212 = scalar_select %p211, %s13, 1
        %s213 = smul.addr %s212, 3
        %s214 = smul.addr %s213, 8
        %s215 = scalar_lea.vmem %s0, %s214
      $region32: #{up_forward.3} parent=27 // pred_fallthru
        _
    $region28: #{up_forward.3} parent=5 // pred_fallthru
      _
    %p216 = scmp.le.s32.totalorder 1, %s13
    %p217 = scmp.lt.s32.totalorder %s13, 3
    %p218 = pnand %p216, %p217
    %p219 = pneg %p218
    // Predicated region
    $region33: #{up_forward.3} parent=5 // pred_check
      _
    $region34: #{up_forward.3} parent=5 // pred_check_branch
      %221 = sbr.rel (%p218) target = $region36
    $region35: #{up_forward.3} parent=5 // pred_region
      %s222 = ssub.s32 %s13, 1
      %p223 = scmp.lt.s32.totalorder %s18, 1
      %s224 = scalar_select %p223, %s18, 1
      %s225 = smul.addr %s224, 3
      %s226 = smul.addr %s225, 8
      %s227 = scalar_lea.vmem %s0, %s226
      %p228 = pneg %p39
      %p229 = pneg %p36
      %p230 = pneg %p60
      %p231 = pneg %p57
      %p232 = pneg %p81
      %p233 = pneg %p78
      %p234 = pneg %p102
      %p235 = pneg %p99
      %p236 = pneg %p128
      %p237 = pneg %p125
      %p238 = scmp.lt.s32.totalorder %s18, 1
      %s239 = scalar_select %p238, %s18, 1
      %s240 = smul.addr %s239, 3
      %s241 = smul.addr %s240, 8
      %s242 = scalar_lea.vmem %s4, %s241
      %p243 = pneg %p154
      %p244 = pneg %p151
      %p245 = scmp.lt.s32.totalorder %s18, 1
      %s246 = scalar_select %p245, %s18, 1
      %s247 = smul.addr %s246, 8
      %s248 = scalar_lea.vmem %s5, %s247
      %p249 = pneg %p180
      %p250 = pneg %p177
      %p251 = scmp.lt.s32.totalorder %s18, 1
      %s252 = scalar_select %p251, %s18, 1
      %s253 = smul.addr %s252, 8
      %s254 = scalar_lea.vmem %s6, %s253
      %p255 = scmp.lt.s32.totalorder %s18, 1
      %s256 = scalar_select %p255, %s18, 1
      %s257 = smul.addr %s256, 3
      %s258 = smul.addr %s257, 8
      %s259 = scalar_lea.vmem %s0, %s258
      %p260 = scmp.lt.s32.totalorder %s18, 1
      %s261 = scalar_select %p260, %s18, 1
      %s262 = smul.addr %s261, 3
      %s263 = smul.addr %s262, 8
      %s264 = scalar_lea.vmem %s4, %s263
      %p265 = scmp.lt.s32.totalorder %s18, 1
      %s266 = scalar_select %p265, %s18, 1
      %s267 = smul.addr %s266, 8
      %s268 = scalar_lea.vmem %s5, %s267
      %p269 = scmp.lt.s32.totalorder %s18, 1
      %s270 = scalar_select %p269, %s18, 1
      %s271 = smul.addr %s270, 8
      %s272 = scalar_lea.vmem %s6, %s271
      %v273 = vld [vmem:[%s259] sm:$0xff]
      %v274 = vld [vmem:[%s259 + $0x8] sm:$0xff]
      %v275 = vld [vmem:[%s259 + $0x10] sm:$0xff]
      %276 = vst [vmem:[#allocation2] sm:$0xff] %v273
      %277 = vst [vmem:[#allocation2 + $0x8] sm:$0xff] %v274
      %vm278 = vcmask 556032
      %279 = vst.msk [vmem:[#allocation2 + $0x10] sm:$0xff] %vm278, %v275
      %v280 = vld [vmem:[%s259] sm:$0xff]
      %v281 = vld [vmem:[%s259 + $0x8] sm:$0xff]
      %v282 = vld [vmem:[%s259 + $0x10] sm:$0xff]
      %286 = vrot.lane.b32.xlu0 %v280, 127
      %v287 = vpop.permute.xlu0 %286
      %288 = vrot.lane.b32.xlu0 %v281, 127
      %v289 = vpop.permute.xlu0 %288
      %290 = vrot.lane.b32.xlu0 %v282, 127
      %v291 = vpop.permute.xlu0 %290
      %vm292 = vcmask 1039360
      %v293 = vsel %vm292, %v287, %v289
      %v294 = vsel %vm292, %v289, %v291
      %298 = vst [vmem:[#allocation2 + $0x18] sm:$0xff] %v293
      %299 = vst [vmem:[#allocation2 + $0x20] sm:$0xff] %v294
      %300 = vst.msk [vmem:[#allocation2 + $0x28] sm:$0xff] %vm278, %v291
      %v301 = vld [vmem:[%s259] sm:$0xff]
      %v302 = vld [vmem:[%s259 + $0x8] sm:$0xff]
      %v303 = vld [vmem:[%s259 + $0x10] sm:$0xff]
      %307 = vrot.lane.b32.xlu0 %v301, 126
      %v308 = vpop.permute.xlu0 %307
      %309 = vrot.lane.b32.xlu0 %v302, 126
      %v310 = vpop.permute.xlu0 %309
      %311 = vrot.lane.b32.xlu0 %v303, 126
      %v312 = vpop.permute.xlu0 %311
      %vm313 = vcmask 1031168
      %v314 = vsel %vm313, %v308, %v310
      %v315 = vsel %vm313, %v310, %v312
      %319 = vst [vmem:[#allocation2 + $0x30] sm:$0xff] %v314
      %320 = vst [vmem:[#allocation2 + $0x38] sm:$0xff] %v315
      %321 = vst.msk [vmem:[#allocation2 + $0x40] sm:$0xff] %vm278, %v312
      %v322 = vld [vmem:[%s259] sm:$0xff]
      %v323 = vld [vmem:[%s259 + $0x8] sm:$0xff]
      %v324 = vld [vmem:[%s259 + $0x10] sm:$0xff]
      %328 = vrot.lane.b32.xlu0 %v322, 110
      %v329 = vpop.permute.xlu0 %328
      %330 = vrot.lane.b32.xlu0 %v323, 110
      %v331 = vpop.permute.xlu0 %330
      %332 = vrot.lane.b32.xlu0 %v324, 110
      %v333 = vpop.permute.xlu0 %332
      %vm334 = vcmask 900096
      %v335 = vsel %vm334, %v329, %v331
      %v336 = vsel %vm334, %v331, %v333
      %340 = vst [vmem:[#allocation2 + $0x48] sm:$0xff] %v335
      %341 = vst [vmem:[#allocation2 + $0x50] sm:$0xff] %v336
      %342 = vst.msk [vmem:[#allocation2 + $0x58] sm:$0xff] %vm278, %v333
      %v343 = vld [vmem:[%s259] sm:$0xff]
      %v344 = vld [vmem:[%s259 + $0x8] sm:$0xff]
      %v345 = vld [vmem:[%s259 + $0x10] sm:$0xff]
      %349 = vrot.lane.b32.xlu0 %v343, 109
      %v350 = vpop.permute.xlu0 %349
      %351 = vrot.lane.b32.xlu0 %v344, 109
      %v352 = vpop.permute.xlu0 %351
      %353 = vrot.lane.b32.xlu0 %v345, 109
      %v354 = vpop.permute.xlu0 %353
      %vm355 = vcmask 891904
      %v356 = vsel %vm355, %v350, %v352
      %v357 = vsel %vm355, %v352, %v354
      %361 = vst [vmem:[#allocation2 + $0x60] sm:$0xff] %v356
      %362 = vst [vmem:[#allocation2 + $0x68] sm:$0xff] %v357
      %363 = vst.msk [vmem:[#allocation2 + $0x70] sm:$0xff] %vm278, %v354
      %v364 = vld [vmem:[%s259] sm:$0xff]
      %v365 = vld [vmem:[%s259 + $0x8] sm:$0xff]
      %v366 = vld [vmem:[%s259 + $0x10] sm:$0xff]
      %370 = vrot.lane.b32.xlu0 %v364, 108
      %v371 = vpop.permute.xlu0 %370
      %372 = vrot.lane.b32.xlu0 %v365, 108
      %v373 = vpop.permute.xlu0 %372
      %374 = vrot.lane.b32.xlu0 %v366, 108
      %v375 = vpop.permute.xlu0 %374
      %vm376 = vcmask 883712
      %v377 = vsel %vm376, %v371, %v373
      %v378 = vsel %vm376, %v373, %v375
      %382 = vst [vmem:[#allocation2 + $0x78] sm:$0xff] %v377
      %383 = vst [vmem:[#allocation2 + $0x80] sm:$0xff] %v378
      %384 = vst.msk [vmem:[#allocation2 + $0x88] sm:$0xff] %vm278, %v375
      %v385 = vld [vmem:[%s259] sm:$0xff]
      %v386 = vld [vmem:[%s259 + $0x8] sm:$0xff]
      %v387 = vld [vmem:[%s259 + $0x10] sm:$0xff]
      %391 = vrot.lane.b32.xlu0 %v385, 92
      %v392 = vpop.permute.xlu0 %391
      %393 = vrot.lane.b32.xlu0 %v386, 92
      %v394 = vpop.permute.xlu0 %393
      %395 = vrot.lane.b32.xlu0 %v387, 92
      %v396 = vpop.permute.xlu0 %395
      %vm397 = vcmask 752640
      %v398 = vsel %vm397, %v392, %v394
      %v399 = vsel %vm397, %v394, %v396
      %403 = vst [vmem:[#allocation2 + $0x90] sm:$0xff] %v398
      %404 = vst [vmem:[#allocation2 + $0x98] sm:$0xff] %v399
      %405 = vst.msk [vmem:[#allocation2 + $0xa0] sm:$0xff] %vm278, %v396
      %v406 = vld [vmem:[%s259] sm:$0xff]
      %v407 = vld [vmem:[%s259 + $0x8] sm:$0xff]
      %v408 = vld [vmem:[%s259 + $0x10] sm:$0xff]
      %412 = vrot.lane.b32.xlu0 %v406, 91
      %v413 = vpop.permute.xlu0 %412
      %414 = vrot.lane.b32.xlu0 %v407, 91
      %v415 = vpop.permute.xlu0 %414
      %416 = vrot.lane.b32.xlu0 %v408, 91
      %v417 = vpop.permute.xlu0 %416
      %vm418 = vcmask 744448
      %v419 = vsel %vm418, %v413, %v415
      %v420 = vsel %vm418, %v415, %v417
      %424 = vst [vmem:[#allocation2 + $0xa8] sm:$0xff] %v419
      %425 = vst [vmem:[#allocation2 + $0xb0] sm:$0xff] %v420
      %426 = vst.msk [vmem:[#allocation2 + $0xb8] sm:$0xff] %vm278, %v417
      %v427 = vld [vmem:[%s259] sm:$0xff]
      %v428 = vld [vmem:[%s259 + $0x8] sm:$0xff]
      %v429 = vld [vmem:[%s259 + $0x10] sm:$0xff]
      %433 = vrot.lane.b32.xlu0 %v427, 90
      %v434 = vpop.permute.xlu0 %433
      %435 = vrot.lane.b32.xlu0 %v428, 90
      %v436 = vpop.permute.xlu0 %435
      %437 = vrot.lane.b32.xlu0 %v429, 90
      %v438 = vpop.permute.xlu0 %437
      %vm439 = vcmask 736256
      %v440 = vsel %vm439, %v434, %v436
      %v441 = vsel %vm439, %v436, %v438
      %445 = vst [vmem:[#allocation2 + $0xc0] sm:$0xff] %v440
      %446 = vst [vmem:[#allocation2 + $0xc8] sm:$0xff] %v441
      %447 = vst.msk [vmem:[#allocation2 + $0xd0] sm:$0xff] %vm278, %v438
      %v448 = vld [vmem:[%s1] sm:$0xff]
      %v449 = vld [vmem:[#allocation2] sm:$0xff]
      %v450 = vld [vmem:[#allocation2 + $0x8] sm:$0xff]
      %v451 = vld [vmem:[#allocation2 + $0x10] sm:$0xff]
      %v452 = vld [vmem:[#allocation2 + $0x18] sm:$0xff]
      %v453 = vld [vmem:[#allocation2 + $0x20] sm:$0xff]
      %v454 = vld [vmem:[#allocation2 + $0x28] sm:$0xff]
      %v455 = vld [vmem:[#allocation2 + $0x30] sm:$0xff]
      %v456 = vld [vmem:[#allocation2 + $0x38] sm:$0xff]
      %v457 = vld [vmem:[#allocation2 + $0x40] sm:$0xff]
      %v458 = vld [vmem:[#allocation2 + $0x48] sm:$0xff]
      %v459 = vld [vmem:[#allocation2 + $0x50] sm:$0xff]
      %v460 = vld [vmem:[#allocation2 + $0x58] sm:$0xff]
      %v461 = vld [vmem:[#allocation2 + $0x60] sm:$0xff]
      %v462 = vld [vmem:[#allocation2 + $0x68] sm:$0xff]
      %v463 = vld [vmem:[#allocation2 + $0x70] sm:$0xff]
      %v464 = vld [vmem:[#allocation2 + $0x78] sm:$0xff]
      %v465 = vld [vmem:[#allocation2 + $0x80] sm:$0xff]
      %v466 = vld [vmem:[#allocation2 + $0x88] sm:$0xff]
      %v467 = vld [vmem:[#allocation2 + $0x90] sm:$0xff]
      %v468 = vld [vmem:[#allocation2 + $0x98] sm:$0xff]
      %v469 = vld [vmem:[#allocation2 + $0xa0] sm:$0xff]
      %v470 = vld [vmem:[#allocation2 + $0xa8] sm:$0xff]
      %v471 = vld [vmem:[#allocation2 + $0xb0] sm:$0xff]
      %v472 = vld [vmem:[#allocation2 + $0xb8] sm:$0xff]
      %v473 = vld [vmem:[#allocation2 + $0xc0] sm:$0xff]
      %v474 = vld [vmem:[#allocation2 + $0xc8] sm:$0xff]
      %v475 = vld [vmem:[#allocation2 + $0xd0] sm:$0xff]
      %v476 = vld [vmem:[%s2] sm:$0xff]
      %478 = vset.pattern.permute.xlu0 0
      %479 = vperm.xlu0 %478, %v476
      %v480 = vpop.permute.xlu0 %479
      %vm482 = vcmask 588800
      %v484 = vsel %vm482, %v448, 0
      %486 = vmatprep.subr.mxu0 %v450
      %487 = vmatpush1.msra.mxu0 %v449
      %488 = vmatprep.subr.mxu0 %v453
      %489 = vmatpush1.msra.mxu0 %v452
      %490 = vmatprep.subr.mxu0 %v456
      %491 = vmatpush1.msra.mxu0 %v455
      %492 = vmatprep.subr.mxu0 %v459
      %493 = vmatpush1.msra.mxu0 %v458
      %494 = vmatprep.subr.mxu0 %v462
      %495 = vmatpush1.msra.mxu0 %v461
      %496 = vmatprep.subr.mxu0 %v465
      %497 = vmatpush1.msra.mxu0 %v464
      %498 = vmatprep.subr.mxu0 %v468
      %499 = vmatpush1.msra.mxu0 %v467
      %500 = vmatprep.subr.mxu0 %v471
      %501 = vmatpush1.msra.mxu0 %v470
      %502 = vmatprep.subr.mxu0 %v474
      %503 = vmatpush1.msra.mxu0 %v473
      %504 = vmatprep.subr.mxu0 0.0
      %505 = vmatpush1.msra.mxu0 0.0
      %506 = vmatprep.subr.mxu0 0.0
      %507 = vmatpush1.msra.mxu0 0.0
      %508 = vmatprep.subr.mxu0 0.0
      %509 = vmatpush1.msra.mxu0 0.0
      %510 = vmatprep.subr.mxu0 0.0
      %511 = vmatpush1.msra.mxu0 0.0
      %512 = vmatprep.subr.mxu0 0.0
      %513 = vmatpush1.msra.mxu0 0.0
      %514 = vmatprep.subr.mxu0 0.0
      %515 = vmatpush1.msra.mxu0 0.0
      %516 = vmatprep.subr.mxu0 0.0
      %517 = vmatpush1.msra.mxu0 0.0
      %518 = vmatprep.subr.mxu0 0.0
      %519 = vmatpush1.msra.mxu0 0.0
      %520 = vmatprep.subr.mxu0 0.0
      %521 = vmatpush1.msra.mxu0 0.0
      %522 = vmatprep.subr.mxu0 0.0
      %523 = vmatpush1.msra.mxu0 0.0
      %524 = vmatprep.subr.mxu0 0.0
      %525 = vmatpush1.msra.mxu0 0.0
      %526 = vmatprep.subr.mxu0 0.0
      %527 = vmatpush1.msra.mxu0 0.0
      %528 = vmatprep.subr.mxu0 0.0
      %529 = vmatpush1.msra.mxu0 0.0
      %530 = vmatprep.subr.mxu0 0.0
      %531 = vmatpush1.msra.mxu0 0.0
      %532 = vmatprep.subr.mxu0 0.0
      %533 = vmatpush1.msra.mxu0 0.0
      %534 = vmatprep.subr.mxu0 0.0
      %535 = vmatpush1.msra.mxu0 0.0
      %536 = vmatprep.subr.mxu0 0.0
      %537 = vmatpush1.msra.mxu0 0.0
      %538 = vmatprep.subr.mxu0 0.0
      %539 = vmatpush1.msra.mxu0 0.0
      %540 = vmatprep.subr.mxu0 0.0
      %541 = vmatpush1.msra.mxu0 0.0
      %542 = vmatprep.subr.mxu0 0.0
      %543 = vmatpush1.msra.mxu0 0.0
      %544 = vmatprep.subr.mxu0 0.0
      %545 = vmatpush1.msra.mxu0 0.0
      %546 = vmatprep.subr.mxu0 0.0
      %547 = vmatpush1.msra.mxu0 0.0
      %548 = vmatprep.subr.mxu0 0.0
      %549 = vmatpush1.msra.mxu0 0.0
      %550 = vmatprep.mubr.f32.mxu0 0.0
      %551 = vmatmul.mubr.f32.gmra.mrb[0].mxu0 %v484
      %v552 = vpop.f32.mrb[0].mxu0
      %v553 = vadd.f32 %v480, %v552
      %v554 = vpop.f32.mrb[0].mxu0
      %v555 = vadd.f32 %v480, %v554
      %556 = vdwg.mxu0
      %557 = vmatprep.subr.mxu0 0.0
      %558 = vmatpush1.msra.mxu0 %v451
      %559 = vmatprep.subr.mxu0 0.0
      %560 = vmatpush1.msra.mxu0 %v454
      %561 = vmatprep.subr.mxu0 0.0
      %562 = vmatpush1.msra.mxu0 %v457
      %563 = vmatprep.subr.mxu0 0.0
      %564 = vmatpush1.msra.mxu0 %v460
      %565 = vmatprep.subr.mxu0 0.0
      %566 = vmatpush1.msra.mxu0 %v463
      %567 = vmatprep.subr.mxu0 0.0
      %568 = vmatpush1.msra.mxu0 %v466
      %569 = vmatprep.subr.mxu0 0.0
      %570 = vmatpush1.msra.mxu0 %v469
      %571 = vmatprep.subr.mxu0 0.0
      %572 = vmatpush1.msra.mxu0 %v472
      %573 = vmatprep.subr.mxu0 0.0
      %574 = vmatpush1.msra.mxu0 %v475
      %575 = vmatprep.subr.mxu0 0.0
      %576 = vmatpush1.msra.mxu0 0.0
      %577 = vmatprep.subr.mxu0 0.0
      %578 = vmatpush1.msra.mxu0 0.0
      %579 = vmatprep.subr.mxu0 0.0
      %580 = vmatpush1.msra.mxu0 0.0
      %581 = vmatprep.subr.mxu0 0.0
      %582 = vmatpush1.msra.mxu0 0.0
      %583 = vmatprep.subr.mxu0 0.0
      %584 = vmatpush1.msra.mxu0 0.0
      %585 = vmatprep.subr.mxu0 0.0
      %586 = vmatpush1.msra.mxu0 0.0
      %587 = vmatprep.subr.mxu0 0.0
      %588 = vmatpush1.msra.mxu0 0.0
      %589 = vmatprep.subr.mxu0 0.0
      %590 = vmatpush1.msra.mxu0 0.0
      %591 = vmatprep.subr.mxu0 0.0
      %592 = vmatpush1.msra.mxu0 0.0
      %593 = vmatprep.subr.mxu0 0.0
      %594 = vmatpush1.msra.mxu0 0.0
      %595 = vmatprep.subr.mxu0 0.0
      %596 = vmatpush1.msra.mxu0 0.0
      %597 = vmatprep.subr.mxu0 0.0
      %598 = vmatpush1.msra.mxu0 0.0
      %599 = vmatprep.subr.mxu0 0.0
      %600 = vmatpush1.msra.mxu0 0.0
      %601 = vmatprep.subr.mxu0 0.0
      %602 = vmatpush1.msra.mxu0 0.0
      %603 = vmatprep.subr.mxu0 0.0
      %604 = vmatpush1.msra.mxu0 0.0
      %605 = vmatprep.subr.mxu0 0.0
      %606 = vmatpush1.msra.mxu0 0.0
      %607 = vmatprep.subr.mxu0 0.0
      %608 = vmatpush1.msra.mxu0 0.0
      %609 = vmatprep.subr.mxu0 0.0
      %610 = vmatpush1.msra.mxu0 0.0
      %611 = vmatprep.subr.mxu0 0.0
      %612 = vmatpush1.msra.mxu0 0.0
      %613 = vmatprep.subr.mxu0 0.0
      %614 = vmatpush1.msra.mxu0 0.0
      %615 = vmatprep.subr.mxu0 0.0
      %616 = vmatpush1.msra.mxu0 0.0
      %617 = vmatprep.subr.mxu0 0.0
      %618 = vmatpush1.msra.mxu0 0.0
      %619 = vmatprep.subr.mxu0 0.0
      %620 = vmatpush1.msra.mxu0 0.0
      %621 = vmatprep.mubr.f32.mxu0 0.0
      %622 = vmatmul.mubr.f32.gmra.mrb[0].mxu0 %v484
      %v623 = vpop.f32.mrb[0].mxu0
      %v624 = vadd.f32 %v480, %v623
      %v625 = vpop.f32.mrb[0].mxu0
      %626 = vdwg.mxu0
      %v627 = vld [vmem:[%s3] sm:$0x7]
      %v629 = vlaneseq
      %v630 = vshrl.u32 %v629, 7
      %v631 = vsub.s32 0, %v630
      %v632 = vrot.slane %v627, %v631
      %v633 = vlaneseq
      %v634 = vshrl.u32 %v633, 7
      %v635 = vsub.s32 1, %v634
      %v636 = vrot.slane %v627, %v635
      %v637 = vlaneseq
      %v638 = vshrl.u32 %v637, 7
      %v639 = vsub.s32 2, %v638
      %v640 = vrot.slane %v627, %v639
      %v644 = vmul.f32 %v553, %v632
      %v645 = vmul.f32 %v555, %v636
      %v646 = vmul.f32 %v624, %v640
      %647 = vst [vmem:[%s264] sm:$0xff] %v644
      %648 = vst [vmem:[%s264 + $0x8] sm:$0xff] %v645
      %649 = vst.msk [vmem:[%s264 + $0x10] sm:$0xff] %vm278, %v646
      %v650 = vadd.f32 %v644, %v645
      %v651 = vsel %vm278, %v646, 0.0
      %v652 = vadd.f32 %v650, %v651
      %653 = vadd.xlane.f32.xlu0 %v652
      %v654 = vpop.xlane.xlu0 %653
      %vm655 = vcmask 7168
      %656 = vst.msk [vmem:[%s268] sm:$0xff] %vm655, %v654
      %v657 = vmul.f32 %v644, %v644
      %v658 = vmul.f32 %v645, %v645
      %v659 = vmul.f32 %v646, %v646
      %v660 = vadd.f32 %v657, %v658
      %v661 = vsel %vm278, %v659, 0.0
      %v662 = vadd.f32 %v660, %v661
      %663 = vadd.xlane.f32.xlu0 %v662
      %v664 = vpop.xlane.xlu0 %663
      %665 = vst.msk [vmem:[%s272] sm:$0xff] %vm655, %v664
      %p666 = scmp.lt.s32.totalorder %s18, 1
      %s667 = scalar_select %p666, %s18, 1
      %s668 = smul.addr %s667, 3
      %s669 = smul.addr %s668, 8
      %s670 = scalar_lea.vmem %s4, %s669
      %p671 = scmp.lt.s32.totalorder %s18, 1
      %s672 = scalar_select %p671, %s18, 1
      %s673 = smul.addr %s672, 8
      %s674 = scalar_lea.vmem %s5, %s673
      %p675 = scmp.lt.s32.totalorder %s18, 1
      %s676 = scalar_select %p675, %s18, 1
      %s677 = smul.addr %s676, 8
      %s678 = scalar_lea.vmem %s6, %s677
      // Predicated region
      $region37: #{up_forward.3} parent=35 // pred_check
        %p679 = pneg %p125
      $region38: #{up_forward.3} parent=35 // pred_check_branch
        %681 = sbr.rel (%p679) target = $region40
      $region39: #{up_forward.3} parent=35 // pred_region
        _
      $region40: #{up_forward.3} parent=35 // pred_fallthru
        _
      // Predicated region
      $region41: #{up_forward.3} parent=35 // pred_check
        %p682 = pneg %p151
      $region42: #{up_forward.3} parent=35 // pred_check_branch
        %684 = sbr.rel (%p682) target = $region44
      $region43: #{up_forward.3} parent=35 // pred_region
        _
      $region44: #{up_forward.3} parent=35 // pred_fallthru
        _
      // Predicated region
      $region45: #{up_forward.3} parent=35 // pred_check
        %p685 = pneg %p177
      $region46: #{up_forward.3} parent=35 // pred_check_branch
        %687 = sbr.rel (%p685) target = $region48
      $region47: #{up_forward.3} parent=35 // pred_region
        _
      $region48: #{up_forward.3} parent=35 // pred_fallthru
        _
    $region36: #{up_forward.3} parent=5 // pred_fallthru
      _
    %p688 = scmp.le.s32.totalorder 2, %s13
    // Predicated region
    $region49: #{up_forward.3} parent=5 // pred_check
      %p689 = pneg %p688
    $region50: #{up_forward.3} parent=5 // pred_check_branch
      %691 = sbr.rel (%p689) target = $region52
    $region51: #{up_forward.3} parent=5 // pred_region
      %s692 = ssub.s32 %s13, 2
      // Predicated region
      $region53: #{up_forward.3} parent=51 // pred_check
        %p693 = pneg %p131
      $region54: #{up_forward.3} parent=51 // pred_check_branch
        %695 = sbr.rel (%p693) target = $region56
      $region55: #{up_forward.3} parent=51 // pred_region
        %p696 = scmp.lt.s32.totalorder %s19, 1
        %s697 = scalar_select %p696, %s19, 1
        %s698 = smul.addr %s697, 3
        %s699 = smul.addr %s698, 8
        %s700 = scalar_lea.vmem %s4, %s699
      $region56: #{up_forward.3} parent=51 // pred_fallthru
        _
      // Predicated region
      $region57: #{up_forward.3} parent=51 // pred_check
        %p701 = pneg %p157
      $region58: #{up_forward.3} parent=51 // pred_check_branch
        %703 = sbr.rel (%p701) target = $region60
      $region59: #{up_forward.3} parent=51 // pred_region
        %p704 = scmp.lt.s32.totalorder %s19, 1
        %s705 = scalar_select %p704, %s19, 1
        %s706 = smul.addr %s705, 8
        %s707 = scalar_lea.vmem %s5, %s706
      $region60: #{up_forward.3} parent=51 // pred_fallthru
        _
      // Predicated region
      $region61: #{up_forward.3} parent=51 // pred_check
        %p708 = pneg %p183
      $region62: #{up_forward.3} parent=51 // pred_check_branch
        %710 = sbr.rel (%p708) target = $region64
      $region63: #{up_forward.3} parent=51 // pred_region
        %p711 = scmp.lt.s32.totalorder %s19, 1
        %s712 = scalar_select %p711, %s19, 1
        %s713 = smul.addr %s712, 8
        %s714 = scalar_lea.vmem %s6, %s713
      $region64: #{up_forward.3} parent=51 // pred_fallthru
        _
    $region52: #{up_forward.3} parent=5 // pred_fallthru
      _
  $region6: #{up_forward.3} parent=0 // loop_footer
    %s17 = sadd.s32 1, %s13
  $region7: #{up_forward.3} parent=0 // loop_footer_branch
    %12 = sbr.rel target = $region3
  $region8: #{up_forward.3} parent=0 // loop_exit
    _

// kernel: up_forward.4
$region0: #{up_forward.4}
  #allocation0 [shape = 'u32[]', space=smem, size = 0x4, offset = 0x4, fixed_abs, tag = 'smem constant byte address 0x4 - core index']
  #allocation1 [shape = 'u32[144,128]{1,0:T(1,128)}', space=vmem, size = 0x12000, scoped, tag = 'internal scratch']
  #allocation2 [shape = 'f32[8,324]{1,0:T(8,128)}', space=vmem, size = 0x3000, scoped, tag = 'scratch operand']
  #allocation3 [shape = 'f32[144,286]{1,0:T(8,128)}', space=vmem, size = 0x36000, scoped, tag = 'scratch operand']
  %s0 = inlined_call_operand.vmem [shape: f32[2,8,324], index: 0, kind: input, shape index: {}]
  %s1 = inlined_call_operand.vmem [shape: f32[8,1], index: 1, kind: input, shape index: {}]
  %s2 = inlined_call_operand.vmem [shape: f32[8,1], index: 2, kind: input, shape index: {}]
  %s3 = inlined_call_operand.vmem [shape: f32[1,324], index: 3, kind: input, shape index: {}]
  %s4 = inlined_call_operand.vmem [shape: f32[2,8,324], index: 4, kind: input, shape index: {}]
  %s5 = inlined_call_operand.vmem [shape: f32[8,144], index: 5, kind: input, shape index: {}]
  %s6 = inlined_call_operand.vmem [shape: f32[8,1], index: 6, kind: input, shape index: {}]
  %s7 = inlined_call_operand.vmem [shape: f32[1,286], index: 7, kind: input, shape index: {}]
  %s8 = inlined_call_operand.vmem [shape: f32[2,8,286], index: 8, kind: output, shape index: {0}]
  %s9 = inlined_call_operand.vmem [shape: f32[2,8,1], index: 9, kind: output, shape index: {1}]
  %s10 = inlined_call_operand.vmem [shape: f32[2,8,1], index: 10, kind: output, shape index: {2}]
  %11 = xla_tuple %s8, %s9, %s10
  %s12 = sld [smem:[#allocation0]]
  $region81: #{up_forward.4} parent=0
    _
  %s14 = ssub.s32 1, %s12
  %s15 = scalar_select 0, %s14, %s12
  loop: start=0, step=1, limit=4
  $region2: #{up_forward.4} parent=0 // loop_pre_header
    _
  $region3: #{up_forward.4} parent=0 // loop_header
    %s17 = sphi 0, %s21
    %p18 = scmp.ge.s32.totalorder %s17, 4
    %s27 = sphi 0, %s29
    %s30 = sphi 0, %s27
    %s31 = sphi 0, %s30
    %s47 = sphi 0, %s31
    %s51 = sphi 0, %s51
    %s53 = sphi 0, %s51
    %s54 = sphi 0, %s53
    %s68 = sphi 0, %s54
    %s72 = sphi 0, %s72
    %s74 = sphi 0, %s72
    %s75 = sphi 0, %s74
    %s89 = sphi 0, %s75
    %s93 = sphi 0, %s93
    %s95 = sphi 0, %s93
    %s96 = sphi 0, %s95
    %s110 = sphi 0, %s96
    %s116 = sphi 0, %s118
    %s119 = sphi 0, %s116
    %s120 = sphi 0, %s119
    %s136 = sphi 0, %s120
    %s140 = sphi 0, %s140
    %s142 = sphi 0, %s140
    %s143 = sphi 0, %s142
    %s157 = sphi 0, %s143
    %s161 = sphi 0, %s161
    %s163 = sphi 0, %s161
    %s164 = sphi 0, %s163
    %s178 = sphi 0, %s164
    %s182 = sphi 0, %s182
    %s184 = sphi 0, %s182
    %s185 = sphi 0, %s184
    %s199 = sphi 0, %s185
    %s205 = sphi 0, %s207
    %s208 = sphi 0, %s205
    %s209 = sphi 0, %s208
    %s225 = sphi 0, %s209
    %s231 = sphi 0, %s233
    %s234 = sphi 0, %s231
    %s235 = sphi 0, %s234
    %s251 = sphi 0, %s235
    %s257 = sphi 0, %s259
    %s260 = sphi 0, %s257
    %s261 = sphi 0, %s260
    %s277 = sphi 0, %s261
  $region4: #{up_forward.4} parent=0 // loop_header_branch
    %20 = sbr.rel (%p18) target = $region8
  $region5: #{up_forward.4} parent=0 // loop_body
    %s22 = ssub.s32 %s17, 1
    %s23 = ssub.s32 %s17, 2
    %s24 = sadd.s32 %s17, 1
    %s25 = ssub.s32 %s17, %s24
    %p26 = scmp.eq.s32.totalorder %s25, 0
    %s28 = sadd.s32 %s27, 1
    %s29 = scalar_select %p26, %s27, %s28
    %p32 = pneg %p26
    %p33 = scmp.eq.s32.totalorder %s17, 1
    %p34 = por %p32, %p33
    %p35 = scmp.ne.s32.totalorder %s27, %s30
    %p36 = scmp.eq.s32.totalorder %s17, 0
    %p37 = por %p35, %p36
    %p38 = scmp.ne.s32.totalorder %s27, %s30
    %p39 = scmp.eq.s32.totalorder %s22, 1
    %p40 = por %p38, %p39
    %p41 = scmp.ne.s32.totalorder %s30, %s31
    %p42 = scmp.eq.s32.totalorder %s22, 0
    %p43 = por %p41, %p42
    %p44 = scmp.ne.s32.totalorder %s30, %s31
    %p45 = scmp.eq.s32.totalorder %s23, 1
    %p46 = por %p44, %p45
    %p48 = scmp.ne.s32.totalorder %s31, %s47
    %p49 = scmp.eq.s32.totalorder %s23, 0
    %p50 = por %p48, %p49
    %s52 = sadd.s32 %s51, 1
    %p55 = scmp.eq.s32.totalorder %s17, 1
    %p56 = scmp.ne.s32.totalorder %s51, %s53
    %p57 = scmp.eq.s32.totalorder %s17, 0
    %p58 = por %p56, %p57
    %p59 = scmp.ne.s32.totalorder %s51, %s53
    %p60 = scmp.eq.s32.totalorder %s22, 1
    %p61 = por %p59, %p60
    %p62 = scmp.ne.s32.totalorder %s53, %s54
    %p63 = scmp.eq.s32.totalorder %s22, 0
    %p64 = por %p62, %p63
    %p65 = scmp.ne.s32.totalorder %s53, %s54
    %p66 = scmp.eq.s32.totalorder %s23, 1
    %p67 = por %p65, %p66
    %p69 = scmp.ne.s32.totalorder %s54, %s68
    %p70 = scmp.eq.s32.totalorder %s23, 0
    %p71 = por %p69, %p70
    %s73 = sadd.s32 %s72, 1
    %p76 = scmp.eq.s32.totalorder %s17, 1
    %p77 = scmp.ne.s32.totalorder %s72, %s74
    %p78 = scmp.eq.s32.totalorder %s17, 0
    %p79 = por %p77, %p78
    %p80 = scmp.ne.s32.totalorder %s72, %s74
    %p81 = scmp.eq.s32.totalorder %s22, 1
    %p82 = por %p80, %p81
    %p83 = scmp.ne.s32.totalorder %s74, %s75
    %p84 = scmp.eq.s32.totalorder %s22, 0
    %p85 = por %p83, %p84
    %p86 = scmp.ne.s32.totalorder %s74, %s75
    %p87 = scmp.eq.s32.totalorder %s23, 1
    %p88 = por %p86, %p87
    %p90 = scmp.ne.s32.totalorder %s75, %s89
    %p91 = scmp.eq.s32.totalorder %s23, 0
    %p92 = por %p90, %p91
    %s94 = sadd.s32 %s93, 1
    %p97 = scmp.eq.s32.totalorder %s17, 1
    %p98 = scmp.ne.s32.totalorder %s93, %s95
    %p99 = scmp.eq.s32.totalorder %s17, 0
    %p100 = por %p98, %p99
    %p101 = scmp.ne.s32.totalorder %s93, %s95
    %p102 = scmp.eq.s32.totalorder %s22, 1
    %p103 = por %p101, %p102
    %p104 = scmp.ne.s32.totalorder %s95, %s96
    %p105 = scmp.eq.s32.totalorder %s22, 0
    %p106 = por %p104, %p105
    %p107 = scmp.ne.s32.totalorder %s95, %s96
    %p108 = scmp.eq.s32.totalorder %s23, 1
    %p109 = por %p107, %p108
    %p111 = scmp.ne.s32.totalorder %s96, %s110
    %p112 = scmp.eq.s32.totalorder %s23, 0
    %p113 = por %p111, %p112
    %s114 = ssub.s32 %s17, %s24
    %p115 = scmp.eq.s32.totalorder %s114, 0
    %s117 = sadd.s32 %s116, 1
    %s118 = scalar_select %p115, %s116, %s117
    %p121 = pneg %p115
    %p122 = scmp.eq.s32.totalorder %s17, 1
    %p123 = por %p121, %p122
    %p124 = scmp.ne.s32.totalorder %s116, %s119
    %p125 = scmp.eq.s32.totalorder %s17, 0
    %p126 = por %p124, %p125
    %p127 = scmp.ne.s32.totalorder %s116, %s119
    %p128 = scmp.eq.s32.totalorder %s22, 1
    %p129 = por %p127, %p128
    %p130 = scmp.ne.s32.totalorder %s119, %s120
    %p131 = scmp.eq.s32.totalorder %s22, 0
    %p132 = por %p130, %p131
    %p133 = scmp.ne.s32.totalorder %s119, %s120
    %p134 = scmp.eq.s32.totalorder %s23, 1
    %p135 = por %p133, %p134
    %p137 = scmp.ne.s32.totalorder %s120, %s136
    %p138 = scmp.eq.s32.totalorder %s23, 0
    %p139 = por %p137, %p138
    %s141 = sadd.s32 %s140, 1
    %p144 = scmp.eq.s32.totalorder %s17, 1
    %p145 = scmp.ne.s32.totalorder %s140, %s142
    %p146 = scmp.eq.s32.totalorder %s17, 0
    %p147 = por %p145, %p146
    %p148 = scmp.ne.s32.totalorder %s140, %s142
    %p149 = scmp.eq.s32.totalorder %s22, 1
    %p150 = por %p148, %p149
    %p151 = scmp.ne.s32.totalorder %s142, %s143
    %p152 = scmp.eq.s32.totalorder %s22, 0
    %p153 = por %p151, %p152
    %p154 = scmp.ne.s32.totalorder %s142, %s143
    %p155 = scmp.eq.s32.totalorder %s23, 1
    %p156 = por %p154, %p155
    %p158 = scmp.ne.s32.totalorder %s143, %s157
    %p159 = scmp.eq.s32.totalorder %s23, 0
    %p160 = por %p158, %p159
    %s162 = sadd.s32 %s161, 1
    %p165 = scmp.eq.s32.totalorder %s17, 1
    %p166 = scmp.ne.s32.totalorder %s161, %s163
    %p167 = scmp.eq.s32.totalorder %s17, 0
    %p168 = por %p166, %p167
    %p169 = scmp.ne.s32.totalorder %s161, %s163
    %p170 = scmp.eq.s32.totalorder %s22, 1
    %p171 = por %p169, %p170
    %p172 = scmp.ne.s32.totalorder %s163, %s164
    %p173 = scmp.eq.s32.totalorder %s22, 0
    %p174 = por %p172, %p173
    %p175 = scmp.ne.s32.totalorder %s163, %s164
    %p176 = scmp.eq.s32.totalorder %s23, 1
    %p177 = por %p175, %p176
    %p179 = scmp.ne.s32.totalorder %s164, %s178
    %p180 = scmp.eq.s32.totalorder %s23, 0
    %p181 = por %p179, %p180
    %s183 = sadd.s32 %s182, 1
    %p186 = scmp.eq.s32.totalorder %s17, 1
    %p187 = scmp.ne.s32.totalorder %s182, %s184
    %p188 = scmp.eq.s32.totalorder %s17, 0
    %p189 = por %p187, %p188
    %p190 = scmp.ne.s32.totalorder %s182, %s184
    %p191 = scmp.eq.s32.totalorder %s22, 1
    %p192 = por %p190, %p191
    %p193 = scmp.ne.s32.totalorder %s184, %s185
    %p194 = scmp.eq.s32.totalorder %s22, 0
    %p195 = por %p193, %p194
    %p196 = scmp.ne.s32.totalorder %s184, %s185
    %p197 = scmp.eq.s32.totalorder %s23, 1
    %p198 = por %p196, %p197
    %p200 = scmp.ne.s32.totalorder %s185, %s199
    %p201 = scmp.eq.s32.totalorder %s23, 0
    %p202 = por %p200, %p201
    %s203 = ssub.s32 %s17, %s24
    %p204 = scmp.eq.s32.totalorder %s203, 0
    %s206 = sadd.s32 %s205, 1
    %s207 = scalar_select %p204, %s205, %s206
    %p210 = pneg %p204
    %p211 = scmp.eq.s32.totalorder %s17, 1
    %p212 = por %p210, %p211
    %p213 = scmp.ne.s32.totalorder %s205, %s208
    %p214 = scmp.eq.s32.totalorder %s17, 0
    %p215 = por %p213, %p214
    %p216 = scmp.ne.s32.totalorder %s205, %s208
    %p217 = scmp.eq.s32.totalorder %s22, 1
    %p218 = por %p216, %p217
    %p219 = scmp.ne.s32.totalorder %s208, %s209
    %p220 = scmp.eq.s32.totalorder %s22, 0
    %p221 = por %p219, %p220
    %p222 = scmp.ne.s32.totalorder %s208, %s209
    %p223 = scmp.eq.s32.totalorder %s23, 1
    %p224 = por %p222, %p223
    %p226 = scmp.ne.s32.totalorder %s209, %s225
    %p227 = scmp.eq.s32.totalorder %s23, 0
    %p228 = por %p226, %p227
    %s229 = ssub.s32 %s17, %s24
    %p230 = scmp.eq.s32.totalorder %s229, 0
    %s232 = sadd.s32 %s231, 1
    %s233 = scalar_select %p230, %s231, %s232
    %p236 = pneg %p230
    %p237 = scmp.eq.s32.totalorder %s17, 1
    %p238 = por %p236, %p237
    %p239 = scmp.ne.s32.totalorder %s231, %s234
    %p240 = scmp.eq.s32.totalorder %s17, 0
    %p241 = por %p239, %p240
    %p242 = scmp.ne.s32.totalorder %s231, %s234
    %p243 = scmp.eq.s32.totalorder %s22, 1
    %p244 = por %p242, %p243
    %p245 = scmp.ne.s32.totalorder %s234, %s235
    %p246 = scmp.eq.s32.totalorder %s22, 0
    %p247 = por %p245, %p246
    %p248 = scmp.ne.s32.totalorder %s234, %s235
    %p249 = scmp.eq.s32.totalorder %s23, 1
    %p250 = por %p248, %p249
    %p252 = scmp.ne.s32.totalorder %s235, %s251
    %p253 = scmp.eq.s32.totalorder %s23, 0
    %p254 = por %p252, %p253
    %s255 = ssub.s32 %s17, %s24
    %p256 = scmp.eq.s32.totalorder %s255, 0
    %s258 = sadd.s32 %s257, 1
    %s259 = scalar_select %p256, %s257, %s258
    %p262 = pneg %p256
    %p263 = scmp.eq.s32.totalorder %s17, 1
    %p264 = por %p262, %p263
    %p265 = scmp.ne.s32.totalorder %s257, %s260
    %p266 = scmp.eq.s32.totalorder %s17, 0
    %p267 = por %p265, %p266
    %p268 = scmp.ne.s32.totalorder %s257, %s260
    %p269 = scmp.eq.s32.totalorder %s22, 1
    %p270 = por %p268, %p269
    %p271 = scmp.ne.s32.totalorder %s260, %s261
    %p272 = scmp.eq.s32.totalorder %s22, 0
    %p273 = por %p271, %p272
    %p274 = scmp.ne.s32.totalorder %s260, %s261
    %p275 = scmp.eq.s32.totalorder %s23, 1
    %p276 = por %p274, %p275
    %p278 = scmp.ne.s32.totalorder %s261, %s277
    %p279 = scmp.eq.s32.totalorder %s23, 0
    %p280 = por %p278, %p279
    %p281 = scmp.le.s32.totalorder 1, %s17
    %p282 = scmp.lt.s32.totalorder %s17, 3
    %p283 = pnand %p281, %p282
    %p284 = pneg %p283
    // Predicated region
    $region9: #{up_forward.4} parent=5 // pred_check
      _
    $region10: #{up_forward.4} parent=5 // pred_check_branch
      %286 = sbr.rel (%p283) target = $region12
    $region11: #{up_forward.4} parent=5 // pred_region
      %s287 = ssub.s32 %s17, 1
      // Predicated region
      $region13: #{up_forward.4} parent=11 // pred_check
        %p288 = pneg %p64
      $region14: #{up_forward.4} parent=11 // pred_check_branch
        %290 = sbr.rel (%p288) target = $region16
      $region15: #{up_forward.4} parent=11 // pred_region
        _
      $region16: #{up_forward.4} parent=11 // pred_fallthru
        _
      // Predicated region
      $region17: #{up_forward.4} parent=11 // pred_check
        %p291 = pneg %p85
      $region18: #{up_forward.4} parent=11 // pred_check_branch
        %293 = sbr.rel (%p291) target = $region20
      $region19: #{up_forward.4} parent=11 // pred_region
        _
      $region20: #{up_forward.4} parent=11 // pred_fallthru
        _
      // Predicated region
      $region21: #{up_forward.4} parent=11 // pred_check
        %p294 = pneg %p106
      $region22: #{up_forward.4} parent=11 // pred_check_branch
        %296 = sbr.rel (%p294) target = $region24
      $region23: #{up_forward.4} parent=11 // pred_region
        _
      $region24: #{up_forward.4} parent=11 // pred_fallthru
        _
      // Predicated region
      $region25: #{up_forward.4} parent=11 // pred_check
        %p297 = pneg %p153
      $region26: #{up_forward.4} parent=11 // pred_check_branch
        %299 = sbr.rel (%p297) target = $region28
      $region27: #{up_forward.4} parent=11 // pred_region
        _
      $region28: #{up_forward.4} parent=11 // pred_fallthru
        _
      // Predicated region
      $region29: #{up_forward.4} parent=11 // pred_check
        %p300 = pneg %p174
      $region30: #{up_forward.4} parent=11 // pred_check_branch
        %302 = sbr.rel (%p300) target = $region32
      $region31: #{up_forward.4} parent=11 // pred_region
        _
      $region32: #{up_forward.4} parent=11 // pred_fallthru
        _
      // Predicated region
      $region33: #{up_forward.4} parent=11 // pred_check
        %p303 = pneg %p195
      $region34: #{up_forward.4} parent=11 // pred_check_branch
        %305 = sbr.rel (%p303) target = $region36
      $region35: #{up_forward.4} parent=11 // pred_region
        _
      $region36: #{up_forward.4} parent=11 // pred_fallthru
        _
    $region12: #{up_forward.4} parent=5 // pred_fallthru
      _
    %p306 = scmp.lt.s32.totalorder %s17, 2
    // Predicated region
    $region37: #{up_forward.4} parent=5 // pred_check
      %p307 = pneg %p306
    $region38: #{up_forward.4} parent=5 // pred_check_branch
      %309 = sbr.rel (%p307) target = $region40
    $region39: #{up_forward.4} parent=5 // pred_region
      // Predicated region
      $region41: #{up_forward.4} parent=39 // pred_check
        %p310 = pneg %p37
      $region42: #{up_forward.4} parent=39 // pred_check_branch
        %312 = sbr.rel (%p310) target = $region44
      $region43: #{up_forward.4} parent=39 // pred_region
        %p313 = scmp.lt.s32.totalorder %s17, 1
        %s314 = scalar_select %p313, %s17, 1
        %s315 = smul.addr %s314, 3
        %s316 = smul.addr %s315, 8
        %s317 = scalar_lea.vmem %s0, %s316
      $region44: #{up_forward.4} parent=39 // pred_fallthru
        _
      // Predicated region
      $region45: #{up_forward.4} parent=39 // pred_check
        %p318 = pneg %p126
      $region46: #{up_forward.4} parent=39 // pred_check_branch
        %320 = sbr.rel (%p318) target = $region48
      $region47: #{up_forward.4} parent=39 // pred_region
        %p321 = scmp.lt.s32.totalorder %s17, 1
        %s322 = scalar_select %p321, %s17, 1
        %s323 = smul.addr %s322, 3
        %s324 = smul.addr %s323, 8
        %s325 = scalar_lea.vmem %s4, %s324
      $region48: #{up_forward.4} parent=39 // pred_fallthru
        _
    $region40: #{up_forward.4} parent=5 // pred_fallthru
      _
    %p326 = scmp.le.s32.totalorder 1, %s17
    %p327 = scmp.lt.s32.totalorder %s17, 3
    %p328 = pnand %p326, %p327
    %p329 = pneg %p328
    // Predicated region
    $region49: #{up_forward.4} parent=5 // pred_check
      _
    $region50: #{up_forward.4} parent=5 // pred_check_branch
      %331 = sbr.rel (%p328) target = $region52
    $region51: #{up_forward.4} parent=5 // pred_region
      %s332 = ssub.s32 %s17, 1
      %p333 = scmp.lt.s32.totalorder %s22, 1
      %s334 = scalar_select %p333, %s22, 1
      %s335 = smul.addr %s334, 3
      %s336 = smul.addr %s335, 8
      %s337 = scalar_lea.vmem %s0, %s336
      %p338 = pneg %p43
      %p339 = pneg %p40
      %p340 = pneg %p64
      %p341 = pneg %p61
      %p342 = pneg %p85
      %p343 = pneg %p82
      %p344 = pneg %p106
      %p345 = pneg %p103
      %p346 = scmp.lt.s32.totalorder %s22, 1
      %s347 = scalar_select %p346, %s22, 1
      %s348 = smul.addr %s347, 3
      %s349 = smul.addr %s348, 8
      %s350 = scalar_lea.vmem %s4, %s349
      %p351 = pneg %p132
      %p352 = pneg %p129
      %p353 = pneg %p153
      %p354 = pneg %p150
      %p355 = pneg %p174
      %p356 = pneg %p171
      %p357 = pneg %p195
      %p358 = pneg %p192
      %p359 = pneg %p221
      %p360 = pneg %p218
      %p361 = scmp.lt.s32.totalorder %s22, 1
      %s362 = scalar_select %p361, %s22, 1
      %s363 = smul.addr %s362, 3
      %s364 = smul.addr %s363, 8
      %s365 = scalar_lea.vmem %s8, %s364
      %p366 = pneg %p247
      %p367 = pneg %p244
      %p368 = scmp.lt.s32.totalorder %s22, 1
      %s369 = scalar_select %p368, %s22, 1
      %s370 = smul.addr %s369, 8
      %s371 = scalar_lea.vmem %s9, %s370
      %p372 = pneg %p273
      %p373 = pneg %p270
      %p374 = scmp.lt.s32.totalorder %s22, 1
      %s375 = scalar_select %p374, %s22, 1
      %s376 = smul.addr %s375, 8
      %s377 = scalar_lea.vmem %s10, %s376
      %p378 = scmp.lt.s32.totalorder %s22, 1
      %s379 = scalar_select %p378, %s22, 1
      %s380 = smul.addr %s379, 3
      %s381 = smul.addr %s380, 8
      %s382 = scalar_lea.vmem %s0, %s381
      %p383 = scmp.lt.s32.totalorder %s22, 1
      %s384 = scalar_select %p383, %s22, 1
      %s385 = smul.addr %s384, 3
      %s386 = smul.addr %s385, 8
      %s387 = scalar_lea.vmem %s4, %s386
      %p388 = scmp.lt.s32.totalorder %s22, 1
      %s389 = scalar_select %p388, %s22, 1
      %s390 = smul.addr %s389, 3
      %s391 = smul.addr %s390, 8
      %s392 = scalar_lea.vmem %s8, %s391
      %p393 = scmp.lt.s32.totalorder %s22, 1
      %s394 = scalar_select %p393, %s22, 1
      %s395 = smul.addr %s394, 8
      %s396 = scalar_lea.vmem %s9, %s395
      %p397 = scmp.lt.s32.totalorder %s22, 1
      %s398 = scalar_select %p397, %s22, 1
      %s399 = smul.addr %s398, 8
      %s400 = scalar_lea.vmem %s10, %s399
      %v401 = vld [vmem:[%s382] sm:$0xff]
      %v402 = vld [vmem:[%s382 + $0x8] sm:$0xff]
      %v403 = vld [vmem:[%s382 + $0x10] sm:$0xff]
      %v404 = vld [vmem:[%s1] sm:$0xff]
      %406 = vset.pattern.permute.xlu0 0
      %407 = vperm.xlu0 %406, %v404
      %v408 = vpop.permute.xlu0 %407
      %v410 = vmul.f32 %v401, %v408
      %v411 = vmul.f32 %v402, %v408
      %v412 = vmul.f32 %v403, %v408
      %v413 = vld [vmem:[%s2] sm:$0xff]
      %415 = vset.pattern.permute.xlu0 0
      %416 = vperm.xlu0 %415, %v413
      %v417 = vpop.permute.xlu0 %416
      %v419 = vadd.f32 %v410, %v417
      %v420 = vadd.f32 %v411, %v417
      %v421 = vadd.f32 %v412, %v417
      %v422 = vmax.f32 %v419, 0.0
      %v423 = vmax.f32 %v420, 0.0
      %v424 = vmax.f32 %v421, 0.0
      %v425 = vld [vmem:[%s3] sm:$0x7]
      %v427 = vlaneseq
      %v428 = vshrl.u32 %v427, 7
      %v429 = vsub.s32 0, %v428
      %v430 = vrot.slane %v425, %v429
      %v431 = vlaneseq
      %v432 = vshrl.u32 %v431, 7
      %v433 = vsub.s32 1, %v432
      %v434 = vrot.slane %v425, %v433
      %v435 = vlaneseq
      %v436 = vshrl.u32 %v435, 7
      %v437 = vsub.s32 2, %v436
      %v438 = vrot.slane %v425, %v437
      %v442 = vmul.f32 %v422, %v430
      %v443 = vmul.f32 %v423, %v434
      %v444 = vmul.f32 %v424, %v438
      %445 = vst [vmem:[#allocation2] sm:$0xff] %v442
      %446 = vst [vmem:[#allocation2 + $0x8] sm:$0xff] %v443
      %vm447 = vcmask 556032
      %448 = vst.msk [vmem:[#allocation2 + $0x10] sm:$0xff] %vm447, %v444
      %v449 = vld [vmem:[#allocation2] sm:$0xff]
      %v450 = vld [vmem:[#allocation2 + $0x8] sm:$0xff]
      %v451 = vld [vmem:[#allocation2 + $0x10] sm:$0xff]
      %452 = vst [vmem:[#allocation3] sm:$0xff] %v449
      %453 = vst [vmem:[#allocation3 + $0x8] sm:$0xff] %v450
      %vm454 = vcmask 244736
      %455 = vst.msk [vmem:[#allocation3 + $0x10] sm:$0xff] %vm454, %v451
      %v456 = vld [vmem:[%s387] sm:$0xff]
      %v457 = vld [vmem:[%s387 + $0x8] sm:$0xff]
      %v458 = vld [vmem:[%s387 + $0x10] sm:$0xff]
      %459 = vst [vmem:[#allocation3 + $0x18] sm:$0xff] %v456
      %460 = vst [vmem:[#allocation3 + $0x20] sm:$0xff] %v457
      %461 = vst.msk [vmem:[#allocation3 + $0x28] sm:$0xff] %vm454, %v458
      %v462 = vld [vmem:[#allocation2] sm:$0xff]
      %v463 = vld [vmem:[#allocation2 + $0x8] sm:$0xff]
      %v464 = vld [vmem:[#allocation2 + $0x10] sm:$0xff]
      %468 = vrot.lane.b32.xlu0 %v462, 127
      %v469 = vpop.permute.xlu0 %468
      %470 = vrot.lane.b32.xlu0 %v463, 127
      %v471 = vpop.permute.xlu0 %470
      %472 = vrot.lane.b32.xlu0 %v464, 127
      %v473 = vpop.permute.xlu0 %472
      %vm474 = vcmask 1039360
      %v475 = vsel %vm474, %v469, %v471
      %v476 = vsel %vm474, %v471, %v473
      %480 = vst [vmem:[#allocation3 + $0x30] sm:$0xff] %v475
      %481 = vst [vmem:[#allocation3 + $0x38] sm:$0xff] %v476
      %482 = vst.msk [vmem:[#allocation3 + $0x40] sm:$0xff] %vm454, %v473
      %v483 = vld [vmem:[%s387] sm:$0xff]
      %v484 = vld [vmem:[%s387 + $0x8] sm:$0xff]
      %v485 = vld [vmem:[%s387 + $0x10] sm:$0xff]
      %489 = vrot.lane.b32.xlu0 %v483, 127
      %v490 = vpop.permute.xlu0 %489
      %491 = vrot.lane.b32.xlu0 %v484, 127
      %v492 = vpop.permute.xlu0 %491
      %493 = vrot.lane.b32.xlu0 %v485, 127
      %v494 = vpop.permute.xlu0 %493
      %v495 = vsel %vm474, %v490, %v492
      %v496 = vsel %vm474, %v492, %v494
      %500 = vst [vmem:[#allocation3 + $0x48] sm:$0xff] %v495
      %501 = vst [vmem:[#allocation3 + $0x50] sm:$0xff] %v496
      %502 = vst.msk [vmem:[#allocation3 + $0x58] sm:$0xff] %vm454, %v494
      %v503 = vld [vmem:[#allocation2] sm:$0xff]
      %v504 = vld [vmem:[#allocation2 + $0x8] sm:$0xff]
      %v505 = vld [vmem:[#allocation2 + $0x10] sm:$0xff]
      %509 = vrot.lane.b32.xlu0 %v503, 126
      %v510 = vpop.permute.xlu0 %509
      %511 = vrot.lane.b32.xlu0 %v504, 126
      %v512 = vpop.permute.xlu0 %511
      %513 = vrot.lane.b32.xlu0 %v505, 126
      %v514 = vpop.permute.xlu0 %513
      %vm515 = vcmask 1031168
      %v516 = vsel %vm515, %v510, %v512
      %v517 = vsel %vm515, %v512, %v514
      %521 = vst [vmem:[#allocation3 + $0x60] sm:$0xff] %v516
      %522 = vst [vmem:[#allocation3 + $0x68] sm:$0xff] %v517
      %523 = vst.msk [vmem:[#allocation3 + $0x70] sm:$0xff] %vm454, %v514
      %v524 = vld [vmem:[%s387] sm:$0xff]
      %v525 = vld [vmem:[%s387 + $0x8] sm:$0xff]
      %v526 = vld [vmem:[%s387 + $0x10] sm:$0xff]
      %530 = vrot.lane.b32.xlu0 %v524, 126
      %v531 = vpop.permute.xlu0 %530
      %532 = vrot.lane.b32.xlu0 %v525, 126
      %v533 = vpop.permute.xlu0 %532
      %534 = vrot.lane.b32.xlu0 %v526, 126
      %v535 = vpop.permute.xlu0 %534
      %v536 = vsel %vm515, %v531, %v533
      %v537 = vsel %vm515, %v533, %v535
      %541 = vst [vmem:[#allocation3 + $0x78] sm:$0xff] %v536
      %542 = vst [vmem:[#allocation3 + $0x80] sm:$0xff] %v537
      %543 = vst.msk [vmem:[#allocation3 + $0x88] sm:$0xff] %vm454, %v535
      %v544 = vld [vmem:[#allocation2] sm:$0xff]
      %v545 = vld [vmem:[#allocation2 + $0x8] sm:$0xff]
      %v546 = vld [vmem:[#allocation2 + $0x10] sm:$0xff]
      %550 = vrot.lane.b32.xlu0 %v544, 110
      %v551 = vpop.permute.xlu0 %550
      %552 = vrot.lane.b32.xlu0 %v545, 110
      %v553 = vpop.permute.xlu0 %552
      %554 = vrot.lane.b32.xlu0 %v546, 110
      %v555 = vpop.permute.xlu0 %554
      %vm556 = vcmask 900096
      %v557 = vsel %vm556, %v551, %v553
      %v558 = vsel %vm556, %v553, %v555
      %562 = vst [vmem:[#allocation3 + $0x90] sm:$0xff] %v557
      %563 = vst [vmem:[#allocation3 + $0x98] sm:$0xff] %v558
      %564 = vst.msk [vmem:[#allocation3 + $0xa0] sm:$0xff] %vm454, %v555
      %v565 = vld [vmem:[%s387] sm:$0xff]
      %v566 = vld [vmem:[%s387 + $0x8] sm:$0xff]
      %v567 = vld [vmem:[%s387 + $0x10] sm:$0xff]
      %571 = vrot.lane.b32.xlu0 %v565, 110
      %v572 = vpop.permute.xlu0 %571
      %573 = vrot.lane.b32.xlu0 %v566, 110
      %v574 = vpop.permute.xlu0 %573
      %575 = vrot.lane.b32.xlu0 %v567, 110
      %v576 = vpop.permute.xlu0 %575
      %v577 = vsel %vm556, %v572, %v574
      %v578 = vsel %vm556, %v574, %v576
      %582 = vst [vmem:[#allocation3 + $0xa8] sm:$0xff] %v577
      %583 = vst [vmem:[#allocation3 + $0xb0] sm:$0xff] %v578
      %584 = vst.msk [vmem:[#allocation3 + $0xb8] sm:$0xff] %vm454, %v576
      %v585 = vld [vmem:[#allocation2] sm:$0xff]
      %v586 = vld [vmem:[#allocation2 + $0x8] sm:$0xff]
      %v587 = vld [vmem:[#allocation2 + $0x10] sm:$0xff]
      %591 = vrot.lane.b32.xlu0 %v585, 109
      %v592 = vpop.permute.xlu0 %591
      %593 = vrot.lane.b32.xlu0 %v586, 109
      %v594 = vpop.permute.xlu0 %593
      %595 = vrot.lane.b32.xlu0 %v587, 109
      %v596 = vpop.permute.xlu0 %595
      %vm597 = vcmask 891904
      %v598 = vsel %vm597, %v592, %v594
      %v599 = vsel %vm597, %v594, %v596
      %603 = vst [vmem:[#allocation3 + $0xc0] sm:$0xff] %v598
      %604 = vst [vmem:[#allocation3 + $0xc8] sm:$0xff] %v599
      %605 = vst.msk [vmem:[#allocation3 + $0xd0] sm:$0xff] %vm454, %v596
      %v606 = vld [vmem:[%s387] sm:$0xff]
      %v607 = vld [vmem:[%s387 + $0x8] sm:$0xff]
      %v608 = vld [vmem:[%s387 + $0x10] sm:$0xff]
      %612 = vrot.lane.b32.xlu0 %v606, 109
      %v613 = vpop.permute.xlu0 %612
      %614 = vrot.lane.b32.xlu0 %v607, 109
      %v615 = vpop.permute.xlu0 %614
      %616 = vrot.lane.b32.xlu0 %v608, 109
      %v617 = vpop.permute.xlu0 %616
      %v618 = vsel %vm597, %v613, %v615
      %v619 = vsel %vm597, %v615, %v617
      %623 = vst [vmem:[#allocation3 + $0xd8] sm:$0xff] %v618
      %624 = vst [vmem:[#allocation3 + $0xe0] sm:$0xff] %v619
      %625 = vst.msk [vmem:[#allocation3 + $0xe8] sm:$0xff] %vm454, %v617
      %v626 = vld [vmem:[#allocation2] sm:$0xff]
      %v627 = vld [vmem:[#allocation2 + $0x8] sm:$0xff]
      %v628 = vld [vmem:[#allocation2 + $0x10] sm:$0xff]
      %632 = vrot.lane.b32.xlu0 %v626, 108
      %v633 = vpop.permute.xlu0 %632
      %634 = vrot.lane.b32.xlu0 %v627, 108
      %v635 = vpop.permute.xlu0 %634
      %636 = vrot.lane.b32.xlu0 %v628, 108
      %v637 = vpop.permute.xlu0 %636
      %vm638 = vcmask 883712
      %v639 = vsel %vm638, %v633, %v635
      %v640 = vsel %vm638, %v635, %v637
      %644 = vst [vmem:[#allocation3 + $0xf0] sm:$0xff] %v639
      %645 = vst [vmem:[#allocation3 + $0xf8] sm:$0xff] %v640
      %646 = vst.msk [vmem:[#allocation3 + $0x100] sm:$0xff] %vm454, %v637
      %v647 = vld [vmem:[%s387] sm:$0xff]
      %v648 = vld [vmem:[%s387 + $0x8] sm:$0xff]
      %v649 = vld [vmem:[%s387 + $0x10] sm:$0xff]
      %653 = vrot.lane.b32.xlu0 %v647, 108
      %v654 = vpop.permute.xlu0 %653
      %655 = vrot.lane.b32.xlu0 %v648, 108
      %v656 = vpop.permute.xlu0 %655
      %657 = vrot.lane.b32.xlu0 %v649, 108
      %v658 = vpop.permute.xlu0 %657
      %v659 = vsel %vm638, %v654, %v656
      %v660 = vsel %vm638, %v656, %v658
      %664 = vst [vmem:[#allocation3 + $0x108] sm:$0xff] %v659
      %665 = vst [vmem:[#allocation3 + $0x110] sm:$0xff] %v660
      %666 = vst.msk [vmem:[#allocation3 + $0x118] sm:$0xff] %vm454, %v658
      %v667 = vld [vmem:[#allocation2] sm:$0xff]
      %v668 = vld [vmem:[#allocation2 + $0x8] sm:$0xff]
      %v669 = vld [vmem:[#allocation2 + $0x10] sm:$0xff]
      %673 = vrot.lane.b32.xlu0 %v667, 92
      %v674 = vpop.permute.xlu0 %673
      %675 = vrot.lane.b32.xlu0 %v668, 92
      %v676 = vpop.permute.xlu0 %675
      %677 = vrot.lane.b32.xlu0 %v669, 92
      %v678 = vpop.permute.xlu0 %677
      %vm679 = vcmask 752640
      %v680 = vsel %vm679, %v674, %v676
      %v681 = vsel %vm679, %v676, %v678
      %685 = vst [vmem:[#allocation3 + $0x120] sm:$0xff] %v680
      %686 = vst [vmem:[#allocation3 + $0x128] sm:$0xff] %v681
      %687 = vst.msk [vmem:[#allocation3 + $0x130] sm:$0xff] %vm454, %v678
      %v688 = vld [vmem:[%s387] sm:$0xff]
      %v689 = vld [vmem:[%s387 + $0x8] sm:$0xff]
      %v690 = vld [vmem:[%s387 + $0x10] sm:$0xff]
      %694 = vrot.lane.b32.xlu0 %v688, 92
      %v695 = vpop.permute.xlu0 %694
      %696 = vrot.lane.b32.xlu0 %v689, 92
      %v697 = vpop.permute.xlu0 %696
      %698 = vrot.lane.b32.xlu0 %v690, 92
      %v699 = vpop.permute.xlu0 %698
      %v700 = vsel %vm679, %v695, %v697
      %v701 = vsel %vm679, %v697, %v699
      %705 = vst [vmem:[#allocation3 + $0x138] sm:$0xff] %v700
      %706 = vst [vmem:[#allocation3 + $0x140] sm:$0xff] %v701
      %707 = vst.msk [vmem:[#allocation3 + $0x148] sm:$0xff] %vm454, %v699
      %v708 = vld [vmem:[#allocation2] sm:$0xff]
      %v709 = vld [vmem:[#allocation2 + $0x8] sm:$0xff]
      %v710 = vld [vmem:[#allocation2 + $0x10] sm:$0xff]
      %714 = vrot.lane.b32.xlu0 %v708, 91
      %v715 = vpop.permute.xlu0 %714
      %716 = vrot.lane.b32.xlu0 %v709, 91
      %v717 = vpop.permute.xlu0 %716
      %718 = vrot.lane.b32.xlu0 %v710, 91
      %v719 = vpop.permute.xlu0 %718
      %vm720 = vcmask 744448
      %v721 = vsel %vm720, %v715, %v717
      %v722 = vsel %vm720, %v717, %v719
      %726 = vst [vmem:[#allocation3 + $0x150] sm:$0xff] %v721
      %727 = vst [vmem:[#allocation3 + $0x158] sm:$0xff] %v722
      %728 = vst.msk [vmem:[#allocation3 + $0x160] sm:$0xff] %vm454, %v719
      %v729 = vld [vmem:[%s387] sm:$0xff]
      %v730 = vld [vmem:[%s387 + $0x8] sm:$0xff]
      %v731 = vld [vmem:[%s387 + $0x10] sm:$0xff]
      %735 = vrot.lane.b32.xlu0 %v729, 91
      %v736 = vpop.permute.xlu0 %735
      %737 = vrot.lane.b32.xlu0 %v730, 91
      %v738 = vpop.permute.xlu0 %737
      %739 = vrot.lane.b32.xlu0 %v731, 91
      %v740 = vpop.permute.xlu0 %739
      %v741 = vsel %vm720, %v736, %v738
      %v742 = vsel %vm720, %v738, %v740
      %746 = vst [vmem:[#allocation3 + $0x168] sm:$0xff] %v741
      %747 = vst [vmem:[#allocation3 + $0x170] sm:$0xff] %v742
      %748 = vst.msk [vmem:[#allocation3 + $0x178] sm:$0xff] %vm454, %v740
      %v749 = vld [vmem:[#allocation2] sm:$0xff]
      %v750 = vld [vmem:[#allocation2 + $0x8] sm:$0xff]
      %v751 = vld [vmem:[#allocation2 + $0x10] sm:$0xff]
      %755 = vrot.lane.b32.xlu0 %v749, 90
      %v756 = vpop.permute.xlu0 %755
      %757 = vrot.lane.b32.xlu0 %v750, 90
      %v758 = vpop.permute.xlu0 %757
      %759 = vrot.lane.b32.xlu0 %v751, 90
      %v760 = vpop.permute.xlu0 %759
      %vm761 = vcmask 736256
      %v762 = vsel %vm761, %v756, %v758
      %v763 = vsel %vm761, %v758, %v760
      %767 = vst [vmem:[#allocation3 + $0x180] sm:$0xff] %v762
      %768 = vst [vmem:[#allocation3 + $0x188] sm:$0xff] %v763
      %769 = vst.msk [vmem:[#allocation3 + $0x190] sm:$0xff] %vm454, %v760
      %v770 = vld [vmem:[%s387] sm:$0xff]
      %v771 = vld [vmem:[%s387 + $0x8] sm:$0xff]
      %v772 = vld [vmem:[%s387 + $0x10] sm:$0xff]
      %776 = vrot.lane.b32.xlu0 %v770, 90
      %v777 = vpop.permute.xlu0 %776
      %778 = vrot.lane.b32.xlu0 %v771, 90
      %v779 = vpop.permute.xlu0 %778
      %780 = vrot.lane.b32.xlu0 %v772, 90
      %v781 = vpop.permute.xlu0 %780
      %v782 = vsel %vm761, %v777, %v779
      %v783 = vsel %vm761, %v779, %v781
      %787 = vst [vmem:[#allocation3 + $0x198] sm:$0xff] %v782
      %788 = vst [vmem:[#allocation3 + $0x1a0] sm:$0xff] %v783
      %789 = vst.msk [vmem:[#allocation3 + $0x1a8] sm:$0xff] %vm454, %v781
      %v790 = vld [vmem:[%s5] sm:$0xff]
      %v791 = vld [vmem:[%s5 + $0x8] sm:$0xff]
      %v792 = vld [vmem:[#allocation3] sm:$0xff]
      %v793 = vld [vmem:[#allocation3 + $0x8] sm:$0xff]
      %v794 = vld [vmem:[#allocation3 + $0x10] sm:$0xff]
      %v795 = vld [vmem:[#allocation3 + $0x18] sm:$0xff]
      %v796 = vld [vmem:[#allocation3 + $0x20] sm:$0xff]
      %v797 = vld [vmem:[#allocation3 + $0x28] sm:$0xff]
      %v798 = vld [vmem:[#allocation3 + $0x30] sm:$0xff]
      %v799 = vld [vmem:[#allocation3 + $0x38] sm:$0xff]
      %v800 = vld [vmem:[#allocation3 + $0x40] sm:$0xff]
      %v801 = vld [vmem:[#allocation3 + $0x48] sm:$0xff]
      %v802 = vld [vmem:[#allocation3 + $0x50] sm:$0xff]
      %v803 = vld [vmem:[#allocation3 + $0x58] sm:$0xff]
      %v804 = vld [vmem:[#allocation3 + $0x60] sm:$0xff]
      %v805 = vld [vmem:[#allocation3 + $0x68] sm:$0xff]
      %v806 = vld [vmem:[#allocation3 + $0x70] sm:$0xff]
      %v807 = vld [vmem:[#allocation3 + $0x78] sm:$0xff]
      %v808 = vld [vmem:[#allocation3 + $0x80] sm:$0xff]
      %v809 = vld [vmem:[#allocation3 + $0x88] sm:$0xff]
      %v810 = vld [vmem:[#allocation3 + $0x90] sm:$0xff]
      %v811 = vld [vmem:[#allocation3 + $0x98] sm:$0xff]
      %v812 = vld [vmem:[#allocation3 + $0xa0] sm:$0xff]
      %v813 = vld [vmem:[#allocation3 + $0xa8] sm:$0xff]
      %v814 = vld [vmem:[#allocation3 + $0xb0] sm:$0xff]
      %v815 = vld [vmem:[#allocation3 + $0xb8] sm:$0xff]
      %v816 = vld [vmem:[#allocation3 + $0xc0] sm:$0xff]
      %v817 = vld [vmem:[#allocation3 + $0xc8] sm:$0xff]
      %v818 = vld [vmem:[#allocation3 + $0xd0] sm:$0xff]
      %v819 = vld [vmem:[#allocation3 + $0xd8] sm:$0xff]
      %v820 = vld [vmem:[#allocation3 + $0xe0] sm:$0xff]
      %v821 = vld [vmem:[#allocation3 + $0xe8] sm:$0xff]
      %v822 = vld [vmem:[#allocation3 + $0xf0] sm:$0xff]
      %v823 = vld [vmem:[#allocation3 + $0xf8] sm:$0xff]
      %v824 = vld [vmem:[#allocation3 + $0x100] sm:$0xff]
      %v825 = vld [vmem:[#allocation3 + $0x108] sm:$0xff]
      %v826 = vld [vmem:[#allocation3 + $0x110] sm:$0xff]
      %v827 = vld [vmem:[#allocation3 + $0x118] sm:$0xff]
      %v828 = vld [vmem:[#allocation3 + $0x120] sm:$0xff]
      %v829 = vld [vmem:[#allocation3 + $0x128] sm:$0xff]
      %v830 = vld [vmem:[#allocation3 + $0x130] sm:$0xff]
      %v831 = vld [vmem:[#allocation3 + $0x138] sm:$0xff]
      %v832 = vld [vmem:[#allocation3 + $0x140] sm:$0xff]
      %v833 = vld [vmem:[#allocation3 + $0x148] sm:$0xff]
      %v834 = vld [vmem:[#allocation3 + $0x150] sm:$0xff]
      %v835 = vld [vmem:[#allocation3 + $0x158] sm:$0xff]
      %v836 = vld [vmem:[#allocation3 + $0x160] sm:$0xff]
      %v837 = vld [vmem:[#allocation3 + $0x168] sm:$0xff]
      %v838 = vld [vmem:[#allocation3 + $0x170] sm:$0xff]
      %v839 = vld [vmem:[#allocation3 + $0x178] sm:$0xff]
      %v840 = vld [vmem:[#allocation3 + $0x180] sm:$0xff]
      %v841 = vld [vmem:[#allocation3 + $0x188] sm:$0xff]
      %v842 = vld [vmem:[#allocation3 + $0x190] sm:$0xff]
      %v843 = vld [vmem:[#allocation3 + $0x198] sm:$0xff]
      %v844 = vld [vmem:[#allocation3 + $0x1a0] sm:$0xff]
      %v845 = vld [vmem:[#allocation3 + $0x1a8] sm:$0xff]
      %v846 = vld [vmem:[%s6] sm:$0xff]
      %848 = vset.pattern.permute.xlu0 0
      %849 = vperm.xlu0 %848, %v846
      %v850 = vpop.permute.xlu0 %849
      %vm852 = vcmask 130048
      %v854 = vsel %vm852, %v791, 0
      %856 = vmatprep.subr.mxu0 %v793
      %857 = vmatpush1.msra.mxu0 %v792
      %858 = vmatprep.subr.mxu0 %v796
      %859 = vmatpush1.msra.mxu0 %v795
      %860 = vmatprep.subr.mxu0 %v799
      %861 = vmatpush1.msra.mxu0 %v798
      %862 = vmatprep.subr.mxu0 %v802
      %863 = vmatpush1.msra.mxu0 %v801
      %864 = vmatprep.subr.mxu0 %v805
      %865 = vmatpush1.msra.mxu0 %v804
      %866 = vmatprep.subr.mxu0 %v808
      %867 = vmatpush1.msra.mxu0 %v807
      %868 = vmatprep.subr.mxu0 %v811
      %869 = vmatpush1.msra.mxu0 %v810
      %870 = vmatprep.subr.mxu0 %v814
      %871 = vmatpush1.msra.mxu0 %v813
      %872 = vmatprep.subr.mxu0 %v817
      %873 = vmatpush1.msra.mxu0 %v816
      %874 = vmatprep.subr.mxu0 %v820
      %875 = vmatpush1.msra.mxu0 %v819
      %876 = vmatprep.subr.mxu0 %v823
      %877 = vmatpush1.msra.mxu0 %v822
      %878 = vmatprep.subr.mxu0 %v826
      %879 = vmatpush1.msra.mxu0 %v825
      %880 = vmatprep.subr.mxu0 %v829
      %881 = vmatpush1.msra.mxu0 %v828
      %882 = vmatprep.subr.mxu0 %v832
      %883 = vmatpush1.msra.mxu0 %v831
      %884 = vmatprep.subr.mxu0 %v835
      %885 = vmatpush1.msra.mxu0 %v834
      %886 = vmatprep.subr.mxu0 %v838
      %887 = vmatpush1.msra.mxu0 %v837
      %888 = vmatprep.subr.mxu0 %v841
      %889 = vmatpush1.msra.mxu0 %v840
      %890 = vmatprep.subr.mxu0 %v844
      %891 = vmatpush1.msra.mxu0 %v843
      %892 = vmatprep.subr.mxu0 0.0
      %893 = vmatpush1.msra.mxu0 0.0
      %894 = vmatprep.subr.mxu0 0.0
      %895 = vmatpush1.msra.mxu0 0.0
      %896 = vmatprep.subr.mxu0 0.0
      %897 = vmatpush1.msra.mxu0 0.0
      %898 = vmatprep.subr.mxu0 0.0
      %899 = vmatpush1.msra.mxu0 0.0
      %900 = vmatprep.subr.mxu0 0.0
      %901 = vmatpush1.msra.mxu0 0.0
      %902 = vmatprep.subr.mxu0 0.0
      %903 = vmatpush1.msra.mxu0 0.0
      %904 = vmatprep.subr.mxu0 0.0
      %905 = vmatpush1.msra.mxu0 0.0
      %906 = vmatprep.subr.mxu0 0.0
      %907 = vmatpush1.msra.mxu0 0.0
      %908 = vmatprep.subr.mxu0 0.0
      %909 = vmatpush1.msra.mxu0 0.0
      %910 = vmatprep.subr.mxu0 0.0
      %911 = vmatpush1.msra.mxu0 0.0
      %912 = vmatprep.subr.mxu0 0.0
      %913 = vmatpush1.msra.mxu0 0.0
      %914 = vmatprep.subr.mxu0 0.0
      %915 = vmatpush1.msra.mxu0 0.0
      %916 = vmatprep.subr.mxu0 0.0
      %917 = vmatpush1.msra.mxu0 0.0
      %918 = vmatprep.subr.mxu0 0.0
      %919 = vmatpush1.msra.mxu0 0.0
      %920 = vmatprep.mubr.f32.mxu0 %v854
      %921 = vmatmul.mubr.f32.gmra.mrb[0].mxu0 %v790
      %v922 = vpop.f32.mrb[0].mxu0
      %v923 = vadd.f32 %v850, %v922
      %v924 = vpop.f32.mrb[0].mxu0
      %v925 = vadd.f32 %v850, %v924
      %926 = vdwg.mxu0
      %927 = vmatprep.subr.mxu0 0.0
      %928 = vmatpush1.msra.mxu0 %v794
      %929 = vmatprep.subr.mxu0 0.0
      %930 = vmatpush1.msra.mxu0 %v797
      %931 = vmatprep.subr.mxu0 0.0
      %932 = vmatpush1.msra.mxu0 %v800
      %933 = vmatprep.subr.mxu0 0.0
      %934 = vmatpush1.msra.mxu0 %v803
      %935 = vmatprep.subr.mxu0 0.0
      %936 = vmatpush1.msra.mxu0 %v806
      %937 = vmatprep.subr.mxu0 0.0
      %938 = vmatpush1.msra.mxu0 %v809
      %939 = vmatprep.subr.mxu0 0.0
      %940 = vmatpush1.msra.mxu0 %v812
      %941 = vmatprep.subr.mxu0 0.0
      %942 = vmatpush1.msra.mxu0 %v815
      %943 = vmatprep.subr.mxu0 0.0
      %944 = vmatpush1.msra.mxu0 %v818
      %945 = vmatprep.subr.mxu0 0.0
      %946 = vmatpush1.msra.mxu0 %v821
      %947 = vmatprep.subr.mxu0 0.0
      %948 = vmatpush1.msra.mxu0 %v824
      %949 = vmatprep.subr.mxu0 0.0
      %950 = vmatpush1.msra.mxu0 %v827
      %951 = vmatprep.subr.mxu0 0.0
      %952 = vmatpush1.msra.mxu0 %v830
      %953 = vmatprep.subr.mxu0 0.0
      %954 = vmatpush1.msra.mxu0 %v833
      %955 = vmatprep.subr.mxu0 0.0
      %956 = vmatpush1.msra.mxu0 %v836
      %957 = vmatprep.subr.mxu0 0.0
      %958 = vmatpush1.msra.mxu0 %v839
      %959 = vmatprep.subr.mxu0 0.0
      %960 = vmatpush1.msra.mxu0 %v842
      %961 = vmatprep.subr.mxu0 0.0
      %962 = vmatpush1.msra.mxu0 %v845
      %963 = vmatprep.subr.mxu0 0.0
      %964 = vmatpush1.msra.mxu0 0.0
      %965 = vmatprep.subr.mxu0 0.0
      %966 = vmatpush1.msra.mxu0 0.0
      %967 = vmatprep.subr.mxu0 0.0
      %968 = vmatpush1.msra.mxu0 0.0
      %969 = vmatprep.subr.mxu0 0.0
      %970 = vmatpush1.msra.mxu0 0.0
      %971 = vmatprep.subr.mxu0 0.0
      %972 = vmatpush1.msra.mxu0 0.0
      %973 = vmatprep.subr.mxu0 0.0
      %974 = vmatpush1.msra.mxu0 0.0
      %975 = vmatprep.subr.mxu0 0.0
      %976 = vmatpush1.msra.mxu0 0.0
      %977 = vmatprep.subr.mxu0 0.0
      %978 = vmatpush1.msra.mxu0 0.0
      %979 = vmatprep.subr.mxu0 0.0
      %980 = vmatpush1.msra.mxu0 0.0
      %981 = vmatprep.subr.mxu0 0.0
      %982 = vmatpush1.msra.mxu0 0.0
      %983 = vmatprep.subr.mxu0 0.0
      %984 = vmatpush1.msra.mxu0 0.0
      %985 = vmatprep.subr.mxu0 0.0
      %986 = vmatpush1.msra.mxu0 0.0
      %987 = vmatprep.subr.mxu0 0.0
      %988 = vmatpush1.msra.mxu0 0.0
      %989 = vmatprep.subr.mxu0 0.0
      %990 = vmatpush1.msra.mxu0 0.0
      %991 = vmatprep.mubr.f32.mxu0 %v854
      %992 = vmatmul.mubr.f32.gmra.mrb[0].mxu0 %v790
      %v993 = vpop.f32.mrb[0].mxu0
      %v994 = vadd.f32 %v850, %v993
      %v995 = vpop.f32.mrb[0].mxu0
      %996 = vdwg.mxu0
      %v997 = vld [vmem:[%s7] sm:$0x7]
      %v999 = vlaneseq
      %v1000 = vshrl.u32 %v999, 7
      %v1001 = vsub.s32 0, %v1000
      %v1002 = vrot.slane %v997, %v1001
      %v1003 = vlaneseq
      %v1004 = vshrl.u32 %v1003, 7
      %v1005 = vsub.s32 1, %v1004
      %v1006 = vrot.slane %v997, %v1005
      %v1007 = vlaneseq
      %v1008 = vshrl.u32 %v1007, 7
      %v1009 = vsub.s32 2, %v1008
      %v1010 = vrot.slane %v997, %v1009
      %v1014 = vmul.f32 %v923, %v1002
      %v1015 = vmul.f32 %v925, %v1006
      %v1016 = vmul.f32 %v994, %v1010
      %1017 = vst [vmem:[%s392] sm:$0xff] %v1014
      %1018 = vst [vmem:[%s392 + $0x8] sm:$0xff] %v1015
      %1019 = vst.msk [vmem:[%s392 + $0x10] sm:$0xff] %vm454, %v1016
      %v1020 = vadd.f32 %v1014, %v1015
      %v1021 = vsel %vm454, %v1016, 0.0
      %v1022 = vadd.f32 %v1020, %v1021
      %1023 = vadd.xlane.f32.xlu0 %v1022
      %v1024 = vpop.xlane.xlu0 %1023
      %vm1025 = vcmask 7168
      %1026 = vst.msk [vmem:[%s396] sm:$0xff] %vm1025, %v1024
      %v1027 = vmul.f32 %v1014, %v1014
      %v1028 = vmul.f32 %v1015, %v1015
      %v1029 = vmul.f32 %v1016, %v1016
      %v1030 = vadd.f32 %v1027, %v1028
      %v1031 = vsel %vm454, %v1029, 0.0
      %v1032 = vadd.f32 %v1030, %v1031
      %1033 = vadd.xlane.f32.xlu0 %v1032
      %v1034 = vpop.xlane.xlu0 %1033
      %1035 = vst.msk [vmem:[%s400] sm:$0xff] %vm1025, %v1034
      %p1036 = scmp.lt.s32.totalorder %s22, 1
      %s1037 = scalar_select %p1036, %s22, 1
      %s1038 = smul.addr %s1037, 3
      %s1039 = smul.addr %s1038, 8
      %s1040 = scalar_lea.vmem %s8, %s1039
      %p1041 = scmp.lt.s32.totalorder %s22, 1
      %s1042 = scalar_select %p1041, %s22, 1
      %s1043 = smul.addr %s1042, 8
      %s1044 = scalar_lea.vmem %s9, %s1043
      %p1045 = scmp.lt.s32.totalorder %s22, 1
      %s1046 = scalar_select %p1045, %s22, 1
      %s1047 = smul.addr %s1046, 8
      %s1048 = scalar_lea.vmem %s10, %s1047
      // Predicated region
      $region53: #{up_forward.4} parent=51 // pred_check
        %p1049 = pneg %p218
      $region54: #{up_forward.4} parent=51 // pred_check_branch
        %1051 = sbr.rel (%p1049) target = $region56
      $region55: #{up_forward.4} parent=51 // pred_region
        _
      $region56: #{up_forward.4} parent=51 // pred_fallthru
        _
      // Predicated region
      $region57: #{up_forward.4} parent=51 // pred_check
        %p1052 = pneg %p244
      $region58: #{up_forward.4} parent=51 // pred_check_branch
        %1054 = sbr.rel (%p1052) target = $region60
      $region59: #{up_forward.4} parent=51 // pred_region
        _
      $region60: #{up_forward.4} parent=51 // pred_fallthru
        _
      // Predicated region
      $region61: #{up_forward.4} parent=51 // pred_check
        %p1055 = pneg %p270
      $region62: #{up_forward.4} parent=51 // pred_check_branch
        %1057 = sbr.rel (%p1055) target = $region64
      $region63: #{up_forward.4} parent=51 // pred_region
        _
      $region64: #{up_forward.4} parent=51 // pred_fallthru
        _
    $region52: #{up_forward.4} parent=5 // pred_fallthru
      _
    %p1058 = scmp.le.s32.totalorder 2, %s17
    // Predicated region
    $region65: #{up_forward.4} parent=5 // pred_check
      %p1059 = pneg %p1058
    $region66: #{up_forward.4} parent=5 // pred_check_branch
      %1061 = sbr.rel (%p1059) target = $region68
    $region67: #{up_forward.4} parent=5 // pred_region
      %s1062 = ssub.s32 %s17, 2
      // Predicated region
      $region69: #{up_forward.4} parent=67 // pred_check
        %p1063 = pneg %p224
      $region70: #{up_forward.4} parent=67 // pred_check_branch
        %1065 = sbr.rel (%p1063) target = $region72
      $region71: #{up_forward.4} parent=67 // pred_region
        %p1066 = scmp.lt.s32.totalorder %s23, 1
        %s1067 = scalar_select %p1066, %s23, 1
        %s1068 = smul.addr %s1067, 3
        %s1069 = smul.addr %s1068, 8
        %s1070 = scalar_lea.vmem %s8, %s1069
      $region72: #{up_forward.4} parent=67 // pred_fallthru
        _
      // Predicated region
      $region73: #{up_forward.4} parent=67 // pred_check
        %p1071 = pneg %p250
      $region74: #{up_forward.4} parent=67 // pred_check_branch
        %1073 = sbr.rel (%p1071) target = $region76
      $region75: #{up_forward.4} parent=67 // pred_region
        %p1074 = scmp.lt.s32.totalorder %s23, 1
        %s1075 = scalar_select %p1074, %s23, 1
        %s1076 = smul.addr %s1075, 8
        %s1077 = scalar_lea.vmem %s9, %s1076
      $region76: #{up_forward.4} parent=67 // pred_fallthru
        _
      // Predicated region
      $region77: #{up_forward.4} parent=67 // pred_check
        %p1078 = pneg %p276
      $region78: #{up_forward.4} parent=67 // pred_check_branch
        %1080 = sbr.rel (%p1078) target = $region80
      $region79: #{up_forward.4} parent=67 // pred_region
        %p1081 = scmp.lt.s32.totalorder %s23, 1
        %s1082 = scalar_select %p1081, %s23, 1
        %s1083 = smul.addr %s1082, 8
        %s1084 = scalar_lea.vmem %s10, %s1083
      $region80: #{up_forward.4} parent=67 // pred_fallthru
        _
    $region68: #{up_forward.4} parent=5 // pred_fallthru
      _
  $region6: #{up_forward.4} parent=0 // loop_footer
    %s21 = sadd.s32 1, %s17
  $region7: #{up_forward.4} parent=0 // loop_footer_branch
    %16 = sbr.rel target = $region3
  $region8: #{up_forward.4} parent=0 // loop_exit
    _

</llo_original>
